<compile_context>
chip_gen: v6e
topology: v6e:2x2x1
jax: 0.10.0
libtpu: 0.0.40
codegen_flags: <defaults>
</compile_context>

<pallas_src>
import jax
import jax.numpy as jnp
from jax.experimental import pallas as pl
from jax.experimental.pallas import tpu as pltpu

LANE = 128
SUB = 16  # batch-tile alignment (covers bf16 sublane packing and f32 tiles)


def _round_up(x, m):
    return ((x + m - 1) // m) * m


def _pad2(a, rows, cols, dtype=None):
    """Zero-pad a 2-D array to (rows, cols); no-op when already that shape/dtype."""
    dtype = a.dtype if dtype is None else jnp.dtype(dtype)
    r, c = a.shape
    if (r, c) == (rows, cols) and a.dtype == dtype:
        return a
    return jnp.zeros((rows, cols), dtype).at[:r, :c].set(a.astype(dtype))


def prepare_params(w1, b1, w2, b2, compute_dtype=jnp.bfloat16):
    """One-time pad (to 128-lane multiples) + cast of the MLP parameters.

    Zero padding is exact through Linear -> SiLU -> Linear (padded rows/cols
    contribute exactly 0).  Call this once; do NOT redo it per forward call.
    """
    F, H = w1.shape
    O = w2.shape[1]
    b1 = jnp.reshape(b1, (1, H))
    b2 = jnp.reshape(b2, (1, O))
    Fp, Hp, Op = (_round_up(d, LANE) for d in (F, H, O))
    return {
        "w1": _pad2(w1, Fp, Hp, compute_dtype),
        "b1": _pad2(b1, 1, Hp, jnp.float32),
        "w2": _pad2(w2, Hp, Op, compute_dtype),
        "b2": _pad2(b2, 1, Op, jnp.float32),
        "dims": (F, H, O),
        "compute_dtype": jnp.dtype(compute_dtype),
    }


def _silu(h):
    # sigmoid via EUP reciprocal: exp and the divide both ride the EUP slot.
    return h * pl.reciprocal(1.0 + jnp.exp(-h), approx=False)


def _make_resident_kernel(h_chunk, n_chunks, compute_dtype):
    """Weights stay VMEM-resident; hidden dim processed in static chunks."""

    def kernel(x_ref, w1_ref, b1_ref, w2_ref, b2_ref, o_ref, acc_ref):
        x = x_ref[...].astype(compute_dtype)

        def chunk(c):
            lo = c * h_chunk
            hi = lo + h_chunk
            h = jnp.dot(x, w1_ref[:, lo:hi], preferred_element_type=jnp.float32)
            h = _silu(h + b1_ref[:, lo:hi])
            return jnp.dot(h.astype(compute_dtype), w2_ref[lo:hi, :],
                           preferred_element_type=jnp.float32)

        if n_chunks == 1:
            o_ref[...] = (chunk(0) + b2_ref[...]).astype(o_ref.dtype)
        else:
            acc_ref[...] = chunk(0)
            for c in range(1, n_chunks):
                acc_ref[...] += chunk(c)
            o_ref[...] = (acc_ref[...] + b2_ref[...]).astype(o_ref.dtype)

    return kernel


def _make_hidden_tiled_kernel(compute_dtype):
    """Grid axis over Hp chunks ("arbitrary") with an f32 VMEM accumulator.

    Used when the weight matrices do not fit VMEM-resident (e.g. v7x, 64 MiB,
    at common transformer widths).
    """

    def kernel(x_ref, w1_ref, b1_ref, w2_ref, b2_ref, o_ref, acc_ref):
        k = pl.program_id(1)

        @pl.when(k == 0)
        def _():
            acc_ref[...] = jnp.zeros_like(acc_ref)

        h = jnp.dot(x_ref[...].astype(compute_dtype), w1_ref[...],
                    preferred_element_type=jnp.float32)
        h = _silu(h + b1_ref[...])
        acc_ref[...] += jnp.dot(h.astype(compute_dtype), w2_ref[...],
                                preferred_element_type=jnp.float32)

        @pl.when(k == pl.num_programs(1) - 1)
        def _():
            o_ref[...] = (acc_ref[...] + b2_ref[...]).astype(o_ref.dtype)

    return kernel


def _vmem_caps():
    try:
        cap = int(pltpu.get_tpu_info().vmem_capacity_bytes)
    except Exception:  # pragma: no cover - conservative default (v7x-sized)
        cap = 64 * 2**20
    if cap <= 64 * 2**20:          # v7x-class part: leave room for scratch/spill
        return cap, int(0.625 * cap)
    return cap, int(0.80 * cap)    # v5e / v6e (128 MiB)


def mlp_block(x, params, *, block_m=None, force_kernel=False):
    """Fused Linear->SiLU->Linear.  `params` comes from `prepare_params`."""
    F, H, O = params["dims"]
    cdt = params["compute_dtype"]
    w1p, b1p, w2p, b2p = params["w1"], params["b1"], params["w2"], params["b2"]
    Fp, Hp = w1p.shape
    Op = w2p.shape[1]

    lead_shape = x.shape[:-1]
    assert x.shape[-1] == F, f"expected last dim {F}, got {x.shape[-1]}"
    x2 = x.reshape(-1, F)
    B = x2.shape[0]
    out_dtype = x.dtype

    # Tiny layers: padded MXU work is mostly redundant; plain XLA wins.
    if not force_kernel and max(F, H, O) < LANE:
        h = jnp.dot(x2.astype(cdt), w1p[:F, :H],
                    preferred_element_type=jnp.float32) + b1p[:, :H]
        h = h * jax.nn.sigmoid(h)
        out = jnp.dot(h.astype(cdt), w2p[:H, :O],
                      preferred_element_type=jnp.float32) + b2p[:, :O]
        return out.astype(out_dtype).reshape(*lead_shape, O)

    vmem_cap, vmem_cap_use = _vmem_caps()
    small_vmem_part = vmem_cap <= 64 * 2**20  # proxy for v7x-class / 2-TC megacore

    if block_m is None:
        block_m = 256 if small_vmem_part else 512

    x_item = jnp.dtype(x.dtype).itemsize
    c_item = cdt.itemsize
    out_item = jnp.dtype(out_dtype).itemsize

    # --- batch tile -------------------------------------------------------
    TM = min(_round_up(block_m, SUB), _round_up(B, SUB))
    # v7x: 2 TCs share the "parallel" batch axis; make sure the grid has >= 2
    # steps when the batch allows it.
    if small_vmem_part and _round_up(B, TM) // TM < 2 and B > SUB:
        TM = _round_up((B + 1) // 2, SUB)

    # --- hidden chunk for the resident path -------------------------------
    if Hp <= 512:
        HC = Hp
    else:
        HC = next(c for c in (512, 256, 128) if Hp % c == 0)
    n_chunks = Hp // HC

    def resident_budget(tm):
        return (2 * tm * Fp * x_item            # double-buffered x tiles
                + 2 * tm * Op * out_item        # double-buffered out tiles
                + (Fp * Hp + Hp * Op) * c_item  # single-buffered weights
                + (Hp + Op) * 4                 # single-buffered f32 biases
                + tm * Op * 4                   # f32 accumulator scratch
                + tm * Fp * c_item              # bf16 copy of the x tile
                + tm * HC * (4 + c_item))       # per-chunk hidden temps

    def tiled_budget(tm, th):
        return (2 * tm * Fp * x_item
                + 2 * tm * Op * out_item
                + 2 * (Fp * th + th * Op) * c_item  # double-buffered weight slabs
                + 2 * (th + Op) * 4
                + tm * Op * 4
                + tm * Fp * c_item
                + tm * th * (4 + c_item))

    # Prefer resident weights (each weight byte read from HBM exactly once);
    # shrink the batch tile (floor 128) before giving up on residency.
    tm = TM
    tm_floor = min(TM, 128)
    use_resident = resident_budget(tm) <= vmem_cap_use
    while not use_resident and tm > tm_floor:
        tm = max(tm_floor, _round_up(tm // 2, SUB))
        use_resident = resident_budget(tm) <= vmem_cap_use

    if not use_resident:
        tm = TM  # hidden-tiled path: keep the big batch tile
        TH = None
        for cand in (2048, 1024, 512, 256, 128):
            if Hp % cand == 0 and tiled_budget(tm, cand) <= vmem_cap_use:
                TH = cand
                break
        if TH is None:
            TH = 128
            while tiled_budget(tm, TH) > vmem_cap_use and tm > SUB:
                tm = max(SUB, _round_up(tm // 2, SUB))
            # TODO(synk): if even (tm=SUB, TH=128) overflows VMEM, an Fp/Op
            # tiled variant would be needed; not reachable at realistic sizes.

    Bp = _round_up(B, tm)
    xp = x2 if (Bp == B and Fp == F) else _pad2(x2, Bp, Fp)

    n_batch_tiles = Bp // tm
    vmem_limit = vmem_cap_use

    common = dict(
        out_shape=jax.ShapeDtypeStruct((Bp, Op), out_dtype),
        out_specs=None,  # filled per path
    )
    del common  # (kept the dict idea out; build each call explicitly below)

    if use_resident:
        kernel = _make_resident_kernel(HC, n_chunks, cdt)
        cost = pl.CostEstimate(
            flops=2 * Bp * Fp * Hp + 2 * Bp * Hp * Op,
            transcendentals=Bp * Hp,
            bytes_accessed=(Bp * Fp * x_item + (Fp * Hp + Hp * Op) * c_item
                            + (Hp + Op) * 4 + Bp * Op * out_item),
        )

        def make_in_specs(weight_pipeline_mode):
            kw = ({} if weight_pipeline_mode is None
                  else {"pipeline_mode": weight_pipeline_mode})
            return [
                pl.BlockSpec((tm, Fp), lambda i: (i, 0)),          # batch-tiled x
                pl.BlockSpec((Fp, Hp), lambda i: (0, 0), **kw),    # resident w1
                pl.BlockSpec((1, Hp), lambda i: (0, 0), **kw),     # resident b1
                pl.BlockSpec((Hp, Op), lambda i: (0, 0), **kw),    # resident w2
                pl.BlockSpec((1, Op), lambda i: (0, 0), **kw),     # resident b2
            ]

        def run(in_specs):
            return pl.pallas_call(
                kernel,
                out_shape=jax.ShapeDtypeStruct((Bp, Op), out_dtype),
                grid=(n_batch_tiles,),
                in_specs=in_specs,
                out_specs=pl.BlockSpec((tm, Op), lambda i: (i, 0)),
                scratch_shapes=[pltpu.VMEM((tm, Op), jnp.float32)],
                compiler_params=pltpu.CompilerParams(
                    dimension_semantics=("parallel",),
                    vmem_limit_bytes=vmem_limit,
                ),
                cost_estimate=cost,
            )(xp, w1p, b1p, w2p, b2p)

        try:
            # Constant index_map => a single pipeline buffer is enough.
            out_p = run(make_in_specs(pl.Buffered(1)))
        except Exception:
            # Fallback for jax versions that reject single-buffered blocks.
            out_p = run(make_in_specs(None))
    else:
        kernel = _make_hidden_tiled_kernel(cdt)
        n_h_tiles = Hp // TH
        cost = pl.CostEstimate(
            flops=2 * Bp * Fp * Hp + 2 * Bp * Hp * Op,
            transcendentals=Bp * Hp,
            bytes_accessed=(Bp * Fp * x_item
                            + n_batch_tiles * (Fp * Hp + Hp * Op) * c_item
                            + (Hp + Op) * 4 + Bp * Op * out_item),
        )
        out_p = pl.pallas_call(
            kernel,
            out_shape=jax.ShapeDtypeStruct((Bp, Op), out_dtype),
            grid=(n_batch_tiles, n_h_tiles),
            in_specs=[
                pl.BlockSpec((tm, Fp), lambda i, k: (i, 0)),
                pl.BlockSpec((Fp, TH), lambda i, k: (0, k)),
                pl.BlockSpec((1, TH), lambda i, k: (0, k)),
                pl.BlockSpec((TH, Op), lambda i, k: (k, 0)),
                pl.BlockSpec((1, Op), lambda i, k: (0, 0)),
            ],
            out_specs=pl.BlockSpec((tm, Op), lambda i, k: (i, 0)),
            scratch_shapes=[pltpu.VMEM((tm, Op), jnp.float32)],
            compiler_params=pltpu.CompilerParams(
                dimension_semantics=("parallel", "arbitrary"),
                vmem_limit_bytes=vmem_limit,
            ),
            cost_estimate=cost,
        )(xp, w1p, b1p, w2p, b2p)

    out = out_p[:B, :O] if (Bp != B or Op != O) else out_p
    return out.reshape(*lead_shape, O)


def init_params(key, in_features, hidden_dim, out_features, dtype=jnp.float32):
    """Deterministic PyTorch-style (uniform +/- 1/sqrt(fan_in)) init."""
    k1, k2, k3, k4 = jax.random.split(key, 4)
    bound1 = 1.0 / (in_features ** 0.5)
    bound2 = 1.0 / (hidden_dim ** 0.5)
    # Stored already transposed relative to torch's (out, in) weight layout.
    w1 = jax.random.uniform(k1, (in_features, hidden_dim), dtype, -bound1, bound1)
    b1 = jax.random.uniform(k2, (1, hidden_dim), dtype, -bound1, bound1)
    w2 = jax.random.uniform(k3, (hidden_dim, out_features), dtype, -bound2, bound2)
    b2 = jax.random.uniform(k4, (1, out_features), dtype, -bound2, bound2)
    return w1, b1, w2, b2


if __name__ == "__main__":
    # Small but lane-aligned shapes (multiples of 128 on every feature dim) so
    # the Pallas kernel path is exercised with zero wrapper padding work.
    B, in_features, hidden_dim, out_features = 64, 128, 256, 128

    key = jax.random.PRNGKey(0)
    kx, kp = jax.random.split(key)
    x = jax.random.normal(kx, (B, in_features), jnp.float32)
    w1, b1, w2, b2 = init_params(kp, in_features, hidden_dim, out_features)

    params = prepare_params(w1, b1, w2, b2)          # one-time pad + cast
    out = mlp_block(x, params)
    out = jax.block_until_ready(out)
    assert out.shape == (B, out_features)
    assert out.dtype == x.dtype

    # Reference with the same bf16-input / f32-accumulate semantics.
    xb = x.astype(jnp.bfloat16)
    h_ref = jnp.dot(xb, w1.astype(jnp.bfloat16),
                    preferred_element_type=jnp.float32) + b1
    h_ref = h_ref * jax.nn.sigmoid(h_ref)
    ref = jnp.dot(h_ref.astype(jnp.bfloat16), w2.astype(jnp.bfloat16),
                  preferred_element_type=jnp.float32) + b2
    assert jnp.allclose(out, ref, atol=2e-2, rtol=2e-2)

    # Sanity-check against the full-f32 math at bf16-level tolerance.
    h32 = x @ w1 + b1
    h32 = h32 * jax.nn.sigmoid(h32)
    ref32 = h32 @ w2 + b2
    assert jnp.allclose(out, ref32, atol=5e-2, rtol=5e-2)

    print("KERNEL_OK")
</pallas_src>

<mosaic_0001>
module attributes {stable_mosaic.version = 11 : i64} {
  func.func @kernel(%arg0: i32, %arg1: memref<32x128xf32, #tpu.memory_space<vmem>>, %arg2: memref<128x256xbf16, #tpu.memory_space<vmem>>, %arg3: memref<1x256xf32, #tpu.memory_space<vmem>>, %arg4: memref<256x128xbf16, #tpu.memory_space<vmem>>, %arg5: memref<1x128xf32, #tpu.memory_space<vmem>>, %arg6: memref<32x128xf32, #tpu.memory_space<vmem>>, %arg7: memref<32x128xf32, #tpu.memory_space<vmem>>) attributes {dimension_semantics = [#tpu.dimension_semantics<parallel>], iteration_bounds = array<i64: 2>, scalar_prefetch = 0 : i64, scratch_operands = 1 : i64, tpu.core_type = #tpu.core_type<tc>, window_params = [{transform_indices = @transform_0, window_bounds = array<i64: 32, 128>}, {pipeline_mode = #tpu.pipeline_mode<synchronous>, transform_indices = @transform_1, window_bounds = array<i64: 128, 256>}, {pipeline_mode = #tpu.pipeline_mode<synchronous>, transform_indices = @transform_2, window_bounds = array<i64: 1, 256>}, {pipeline_mode = #tpu.pipeline_mode<synchronous>, transform_indices = @transform_3, window_bounds = array<i64: 256, 128>}, {pipeline_mode = #tpu.pipeline_mode<synchronous>, transform_indices = @transform_4, window_bounds = array<i64: 1, 128>}, {transform_indices = @transform_5, window_bounds = array<i64: 32, 128>}]} {
    %c0 = arith.constant 0 : index
    %c0_0 = arith.constant 0 : index
    %0 = vector.load %arg1[%c0, %c0_0] : memref<32x128xf32, #tpu.memory_space<vmem>>, vector<32x128xf32>
    %1 = arith.truncf %0 : vector<32x128xf32> to vector<32x128xbf16>
    %c0_1 = arith.constant 0 : index
    %c0_2 = arith.constant 0 : index
    %2 = vector.load %arg2[%c0_1, %c0_2] : memref<128x256xbf16, #tpu.memory_space<vmem>>, vector<128x256xbf16>
    %cst = arith.constant dense<0.000000e+00> : vector<32x256xf32>
    %3 = tpu.matmul %1, %2, %cst {dimension_numbers = #tpu.dot_dimension_numbers<[1], [0], [0], [1], [0, 0, 1, 1], [], []>} : vector<32x128xbf16>, vector<128x256xbf16>, vector<32x256xf32> -> vector<32x256xf32>
    %c0_3 = arith.constant 0 : index
    %c0_4 = arith.constant 0 : index
    %4 = vector.load %arg3[%c0_3, %c0_4] : memref<1x256xf32, #tpu.memory_space<vmem>>, vector<1x256xf32>
    %5 = vector.broadcast %4 : vector<1x256xf32> to vector<32x256xf32>
    %6 = arith.addf %3, %5 : vector<32x256xf32>
    %cst_5 = arith.constant 0.000000e+00 : f32
    %7 = vector.broadcast %cst_5 : f32 to vector<32x256xf32>
    %8 = arith.subf %7, %6 : vector<32x256xf32>
    %9 = math.exp %8 : vector<32x256xf32>
    %cst_6 = arith.constant 1.000000e+00 : f32
    %10 = vector.broadcast %cst_6 : f32 to vector<32x256xf32>
    %11 = arith.addf %10, %9 : vector<32x256xf32>
    %12 = tpu.reciprocal %11 : vector<32x256xf32> -> vector<32x256xf32>
    %13 = arith.mulf %6, %12 : vector<32x256xf32>
    %14 = arith.truncf %13 : vector<32x256xf32> to vector<32x256xbf16>
    %c0_7 = arith.constant 0 : index
    %c0_8 = arith.constant 0 : index
    %15 = vector.load %arg4[%c0_7, %c0_8] : memref<256x128xbf16, #tpu.memory_space<vmem>>, vector<256x128xbf16>
    %cst_9 = arith.constant dense<0.000000e+00> : vector<32x128xf32>
    %16 = tpu.matmul %14, %15, %cst_9 {dimension_numbers = #tpu.dot_dimension_numbers<[1], [0], [0], [1], [0, 0, 1, 1], [], []>} : vector<32x256xbf16>, vector<256x128xbf16>, vector<32x128xf32> -> vector<32x128xf32>
    %c0_10 = arith.constant 0 : index
    %c0_11 = arith.constant 0 : index
    %17 = vector.load %arg5[%c0_10, %c0_11] : memref<1x128xf32, #tpu.memory_space<vmem>>, vector<1x128xf32>
    %18 = vector.broadcast %17 : vector<1x128xf32> to vector<32x128xf32>
    %19 = arith.addf %16, %18 : vector<32x128xf32>
    %c0_12 = arith.constant 0 : index
    %c0_13 = arith.constant 0 : index
    %20 = vector.load %arg6[%c0_12, %c0_13] : memref<32x128xf32, #tpu.memory_space<vmem>>, vector<32x128xf32>
    tpu.vector_store %arg6[%c0_12, %c0_13], %19 {strides = array<i32>} : memref<32x128xf32, #tpu.memory_space<vmem>>, vector<32x128xf32>,
    return
  }
  func.func @transform_0(%arg0: i32) -> (i32, i32) {
    %c0_i32 = arith.constant 0 : i32
    %c0_i32_0 = arith.constant 0 : i32
    return %arg0, %c0_i32 : i32, i32
  }
  func.func @transform_1(%arg0: i32) -> (i32, i32) {
    %c0_i32 = arith.constant 0 : i32
    %c0_i32_0 = arith.constant 0 : i32
    %c0_i32_1 = arith.constant 0 : i32
    return %c0_i32, %c0_i32_0 : i32, i32
  }
  func.func @transform_2(%arg0: i32) -> (i32, i32) {
    %c0_i32 = arith.constant 0 : i32
    %c0_i32_0 = arith.constant 0 : i32
    %c0_i32_1 = arith.constant 0 : i32
    return %c0_i32, %c0_i32_0 : i32, i32
  }
  func.func @transform_3(%arg0: i32) -> (i32, i32) {
    %c0_i32 = arith.constant 0 : i32
    %c0_i32_0 = arith.constant 0 : i32
    %c0_i32_1 = arith.constant 0 : i32
    return %c0_i32, %c0_i32_0 : i32, i32
  }
  func.func @transform_4(%arg0: i32) -> (i32, i32) {
    %c0_i32 = arith.constant 0 : i32
    %c0_i32_0 = arith.constant 0 : i32
    %c0_i32_1 = arith.constant 0 : i32
    return %c0_i32, %c0_i32_0 : i32, i32
  }
  func.func @transform_5(%arg0: i32) -> (i32, i32) {
    %c0_i32 = arith.constant 0 : i32
    %c0_i32_0 = arith.constant 0 : i32
    return %arg0, %c0_i32 : i32, i32
  }
}

module attributes {stable_mosaic.version = 11 : i64} {
  func.func @kernel(%arg0: i32, %arg1: memref<32x128xf32, #tpu.memory_space<vmem>>, %arg2: memref<128x256xbf16, #tpu.memory_space<vmem>>, %arg3: memref<1x256xf32, #tpu.memory_space<vmem>>, %arg4: memref<256x128xbf16, #tpu.memory_space<vmem>>, %arg5: memref<1x128xf32, #tpu.memory_space<vmem>>, %arg6: memref<32x128xf32, #tpu.memory_space<vmem>>, %arg7: memref<32x128xf32, #tpu.memory_space<vmem>>) attributes {dimension_semantics = [#tpu.dimension_semantics<parallel>], iteration_bounds = array<i64: 2>, scalar_prefetch = 0 : i64, scratch_operands = 1 : i64, tpu.core_type = #tpu.core_type<tc>, window_params = [{transform_indices = @transform_0, window_bounds = array<i64: 32, 128>}, {pipeline_mode = #tpu.pipeline_mode<synchronous>, transform_indices = @transform_1, window_bounds = array<i64: 128, 256>}, {pipeline_mode = #tpu.pipeline_mode<synchronous>, transform_indices = @transform_2, window_bounds = array<i64: 1, 256>}, {pipeline_mode = #tpu.pipeline_mode<synchronous>, transform_indices = @transform_3, window_bounds = array<i64: 256, 128>}, {pipeline_mode = #tpu.pipeline_mode<synchronous>, transform_indices = @transform_4, window_bounds = array<i64: 1, 128>}, {transform_indices = @transform_5, window_bounds = array<i64: 32, 128>}]} {
    %c0 = arith.constant 0 : index
    %c0_0 = arith.constant 0 : index
    %0 = vector.load %arg1[%c0, %c0_0] : memref<32x128xf32, #tpu.memory_space<vmem>>, vector<32x128xf32>
    %1 = arith.truncf %0 : vector<32x128xf32> to vector<32x128xbf16>
    %c0_1 = arith.constant 0 : index
    %c0_2 = arith.constant 0 : index
    %2 = vector.load %arg2[%c0_1, %c0_2] : memref<128x256xbf16, #tpu.memory_space<vmem>>, vector<128x256xbf16>
    %cst = arith.constant dense<0.000000e+00> : vector<32x256xf32>
    %3 = tpu.matmul %1, %2, %cst {dimension_numbers = #tpu.dot_dimension_numbers<[1], [0], [0], [1], [0, 0, 1, 1], [], []>} : vector<32x128xbf16>, vector<128x256xbf16>, vector<32x256xf32> -> vector<32x256xf32>
    %c0_3 = arith.constant 0 : index
    %c0_4 = arith.constant 0 : index
    %4 = vector.load %arg3[%c0_3, %c0_4] : memref<1x256xf32, #tpu.memory_space<vmem>>, vector<1x256xf32>
    %5 = vector.broadcast %4 : vector<1x256xf32> to vector<32x256xf32>
    %6 = arith.addf %3, %5 : vector<32x256xf32>
    %cst_5 = arith.constant 0.000000e+00 : f32
    %7 = vector.broadcast %cst_5 : f32 to vector<32x256xf32>
    %8 = arith.subf %7, %6 : vector<32x256xf32>
    %9 = math.exp %8 : vector<32x256xf32>
    %cst_6 = arith.constant 1.000000e+00 : f32
    %10 = vector.broadcast %cst_6 : f32 to vector<32x256xf32>
    %11 = arith.addf %10, %9 : vector<32x256xf32>
    %12 = tpu.reciprocal %11 : vector<32x256xf32> -> vector<32x256xf32>
    %13 = arith.mulf %6, %12 : vector<32x256xf32>
    %14 = arith.truncf %13 : vector<32x256xf32> to vector<32x256xbf16>
    %c0_7 = arith.constant 0 : index
    %c0_8 = arith.constant 0 : index
    %15 = vector.load %arg4[%c0_7, %c0_8] : memref<256x128xbf16, #tpu.memory_space<vmem>>, vector<256x128xbf16>
    %cst_9 = arith.constant dense<0.000000e+00> : vector<32x128xf32>
    %16 = tpu.matmul %14, %15, %cst_9 {dimension_numbers = #tpu.dot_dimension_numbers<[1], [0], [0], [1], [0, 0, 1, 1], [], []>} : vector<32x256xbf16>, vector<256x128xbf16>, vector<32x128xf32> -> vector<32x128xf32>
    %c0_10 = arith.constant 0 : index
    %c0_11 = arith.constant 0 : index
    %17 = vector.load %arg5[%c0_10, %c0_11] : memref<1x128xf32, #tpu.memory_space<vmem>>, vector<1x128xf32>
    %18 = vector.broadcast %17 : vector<1x128xf32> to vector<32x128xf32>
    %19 = arith.addf %16, %18 : vector<32x128xf32>
    %c0_12 = arith.constant 0 : index
    %c0_13 = arith.constant 0 : index
    %20 = vector.load %arg6[%c0_12, %c0_13] : memref<32x128xf32, #tpu.memory_space<vmem>>, vector<32x128xf32>
    tpu.vector_store %arg6[%c0_12, %c0_13], %19 {strides = array<i32>} : memref<32x128xf32, #tpu.memory_space<vmem>>, vector<32x128xf32>,
    return
  }
  func.func @transform_0(%arg0: i32) -> (i32, i32) {
    %c0_i32 = arith.constant 0 : i32
    %c0_i32_0 = arith.constant 0 : i32
    return %arg0, %c0_i32 : i32, i32
  }
  func.func @transform_1(%arg0: i32) -> (i32, i32) {
    %c0_i32 = arith.constant 0 : i32
    %c0_i32_0 = arith.constant 0 : i32
    %c0_i32_1 = arith.constant 0 : i32
    return %c0_i32, %c0_i32_0 : i32, i32
  }
  func.func @transform_2(%arg0: i32) -> (i32, i32) {
    %c0_i32 = arith.constant 0 : i32
    %c0_i32_0 = arith.constant 0 : i32
    %c0_i32_1 = arith.constant 0 : i32
    return %c0_i32, %c0_i32_0 : i32, i32
  }
  func.func @transform_3(%arg0: i32) -> (i32, i32) {
    %c0_i32 = arith.constant 0 : i32
    %c0_i32_0 = arith.constant 0 : i32
    %c0_i32_1 = arith.constant 0 : i32
    return %c0_i32, %c0_i32_0 : i32, i32
  }
  func.func @transform_4(%arg0: i32) -> (i32, i32) {
    %c0_i32 = arith.constant 0 : i32
    %c0_i32_0 = arith.constant 0 : i32
    %c0_i32_1 = arith.constant 0 : i32
    return %c0_i32, %c0_i32_0 : i32, i32
  }
  func.func @transform_5(%arg0: i32) -> (i32, i32) {
    %c0_i32 = arith.constant 0 : i32
    %c0_i32_0 = arith.constant 0 : i32
    return %arg0, %c0_i32 : i32, i32
  }
}

</mosaic_0001>

<llo_original>
// kernel: tpu_custom_call.1
$region0: #{tpu_custom_call.1}
  #allocation0 [shape = 'u32[]', space=smem, size = 0x4, offset = 0x4, fixed_abs, tag = 'smem constant byte address 0x4 - core index']
  #allocation1 [shape = 'u32[144,128]{1,0:T(1,128)}', space=vmem, size = 0x12000, scoped, tag = 'internal scratch']
  #allocation2 [shape = 'f32[32,128]{1,0:T(8,128)}', space=vmem, size = 0x4000, scoped, tag = 'scratch operand']
  %s0 = inlined_call_operand.hbm [shape: f32[64,128], index: 0, kind: input, shape index: {}]
  %s1 = inlined_call_operand.hbm [shape: bf16[128,256], index: 1, kind: input, shape index: {}]
  %s2 = inlined_call_operand.vmem [shape: f32[1,256], index: 2, kind: input, shape index: {}]
  %s3 = inlined_call_operand.hbm [shape: bf16[256,128], index: 3, kind: input, shape index: {}]
  %s4 = inlined_call_operand.vmem [shape: f32[1,128], index: 4, kind: input, shape index: {}]
  %s5 = inlined_call_operand.hbm [shape: f32[64,128], index: 5, kind: output, shape index: {}]
  %s6 = sld [smem:[#allocation0]]
  $region65: #{tpu_custom_call.1} parent=0
    _
  %s8 = ssub.s32 1, %s6
  %s9 = scalar_select 0, %s8, %s6
  $region1: #{tpu_custom_call.1} parent=0
    #allocation3 [shape = 'u8[32768]{0}', space=vmem, size = 0x8000, scoped, tag = 'input window, operand 0']
    #allocation4 [shape = 's32[2]{0}', space=sflag, size = 0x8, scoped, tag = 'scoped memory for tpu_custom_call.1']
    #allocation5 [shape = 's32[2]{0}', space=sflag, size = 0x8, scoped, tag = 'scoped memory for tpu_custom_call.1']
    #allocation6 [shape = 'u8[65536]{0}', space=vmem, size = 0x10000, scoped, tag = 'input window, operand 1, single buffered']
    #allocation7 [shape = 's32[1]{0}', space=sflag, size = 0x4, scoped, tag = 'scoped memory for tpu_custom_call.1']
    #allocation8 [shape = 'u8[65536]{0}', space=vmem, size = 0x10000, scoped, tag = 'input window, operand 3, single buffered']
    #allocation9 [shape = 'u8[32768]{0}', space=vmem, size = 0x8000, scoped, tag = 'output window, operand 0']
    %10 = vsyncpa [#allocation4], 0
    %s11 = scalar_lea.sflag [#allocation4], 1
    %12 = vsyncpa %s11, 0
    %13 = vsyncpa [#allocation7], 0
    %14 = vsyncpa [#allocation5], 0
    %s15 = scalar_lea.sflag [#allocation5], 1
    %16 = vsyncpa %s15, 0
    loop: start=0, step=1, limit=4
    $region2: #{tpu_custom_call.1} parent=1 // loop_pre_header
      _
    $region3: #{tpu_custom_call.1} parent=1 // loop_header
      %s18 = sphi 0, %s22
      %p19 = scmp.ge.s32.totalorder %s18, 4
      %s28 = sphi 0, %s30
      %s31 = sphi 0, %s28
      %s32 = sphi 0, %s31
      %s48 = sphi 0, %s32
      %s52 = sphi 0, %s52
      %s54 = sphi 0, %s52
      %s55 = sphi 0, %s54
      %s69 = sphi 0, %s55
      %s73 = sphi 0, %s73
      %s75 = sphi 0, %s73
      %s76 = sphi 0, %s75
      %s90 = sphi 0, %s76
      %s94 = sphi 0, %s94
      %s96 = sphi 0, %s94
      %s97 = sphi 0, %s96
      %s111 = sphi 0, %s97
      %s115 = sphi 0, %s115
      %s117 = sphi 0, %s115
      %s118 = sphi 0, %s117
      %s132 = sphi 0, %s118
      %s138 = sphi 0, %s140
      %s141 = sphi 0, %s138
      %s142 = sphi 0, %s141
      %s158 = sphi 0, %s142
    $region4: #{tpu_custom_call.1} parent=1 // loop_header_branch
      %21 = sbr.rel (%p19) target = $region8
    $region5: #{tpu_custom_call.1} parent=1 // loop_body
      %s23 = ssub.s32 %s18, 1
      %s24 = ssub.s32 %s18, 2
      %s25 = sadd.s32 %s18, 1
      %s26 = ssub.s32 %s18, %s25
      %p27 = scmp.eq.s32.totalorder %s26, 0
      %s29 = sadd.s32 %s28, 1
      %s30 = scalar_select %p27, %s28, %s29
      %p33 = pneg %p27
      %p34 = scmp.eq.s32.totalorder %s18, 1
      %p35 = por %p33, %p34
      %p36 = scmp.ne.s32.totalorder %s28, %s31
      %p37 = scmp.eq.s32.totalorder %s18, 0
      %p38 = por %p36, %p37
      %p39 = scmp.ne.s32.totalorder %s28, %s31
      %p40 = scmp.eq.s32.totalorder %s23, 1
      %p41 = por %p39, %p40
      %p42 = scmp.ne.s32.totalorder %s31, %s32
      %p43 = scmp.eq.s32.totalorder %s23, 0
      %p44 = por %p42, %p43
      %p45 = scmp.ne.s32.totalorder %s31, %s32
      %p46 = scmp.eq.s32.totalorder %s24, 1
      %p47 = por %p45, %p46
      %p49 = scmp.ne.s32.totalorder %s32, %s48
      %p50 = scmp.eq.s32.totalorder %s24, 0
      %p51 = por %p49, %p50
      %s53 = sadd.s32 %s52, 1
      %p56 = scmp.eq.s32.totalorder %s18, 1
      %p57 = scmp.ne.s32.totalorder %s52, %s54
      %p58 = scmp.eq.s32.totalorder %s18, 0
      %p59 = por %p57, %p58
      %p60 = scmp.ne.s32.totalorder %s52, %s54
      %p61 = scmp.eq.s32.totalorder %s23, 1
      %p62 = por %p60, %p61
      %p63 = scmp.ne.s32.totalorder %s54, %s55
      %p64 = scmp.eq.s32.totalorder %s23, 0
      %p65 = por %p63, %p64
      %p66 = scmp.ne.s32.totalorder %s54, %s55
      %p67 = scmp.eq.s32.totalorder %s24, 1
      %p68 = por %p66, %p67
      %p70 = scmp.ne.s32.totalorder %s55, %s69
      %p71 = scmp.eq.s32.totalorder %s24, 0
      %p72 = por %p70, %p71
      %s74 = sadd.s32 %s73, 1
      %p77 = scmp.eq.s32.totalorder %s18, 1
      %p78 = scmp.ne.s32.totalorder %s73, %s75
      %p79 = scmp.eq.s32.totalorder %s18, 0
      %p80 = por %p78, %p79
      %p81 = scmp.ne.s32.totalorder %s73, %s75
      %p82 = scmp.eq.s32.totalorder %s23, 1
      %p83 = por %p81, %p82
      %p84 = scmp.ne.s32.totalorder %s75, %s76
      %p85 = scmp.eq.s32.totalorder %s23, 0
      %p86 = por %p84, %p85
      %p87 = scmp.ne.s32.totalorder %s75, %s76
      %p88 = scmp.eq.s32.totalorder %s24, 1
      %p89 = por %p87, %p88
      %p91 = scmp.ne.s32.totalorder %s76, %s90
      %p92 = scmp.eq.s32.totalorder %s24, 0
      %p93 = por %p91, %p92
      %s95 = sadd.s32 %s94, 1
      %p98 = scmp.eq.s32.totalorder %s18, 1
      %p99 = scmp.ne.s32.totalorder %s94, %s96
      %p100 = scmp.eq.s32.totalorder %s18, 0
      %p101 = por %p99, %p100
      %p102 = scmp.ne.s32.totalorder %s94, %s96
      %p103 = scmp.eq.s32.totalorder %s23, 1
      %p104 = por %p102, %p103
      %p105 = scmp.ne.s32.totalorder %s96, %s97
      %p106 = scmp.eq.s32.totalorder %s23, 0
      %p107 = por %p105, %p106
      %p108 = scmp.ne.s32.totalorder %s96, %s97
      %p109 = scmp.eq.s32.totalorder %s24, 1
      %p110 = por %p108, %p109
      %p112 = scmp.ne.s32.totalorder %s97, %s111
      %p113 = scmp.eq.s32.totalorder %s24, 0
      %p114 = por %p112, %p113
      %s116 = sadd.s32 %s115, 1
      %p119 = scmp.eq.s32.totalorder %s18, 1
      %p120 = scmp.ne.s32.totalorder %s115, %s117
      %p121 = scmp.eq.s32.totalorder %s18, 0
      %p122 = por %p120, %p121
      %p123 = scmp.ne.s32.totalorder %s115, %s117
      %p124 = scmp.eq.s32.totalorder %s23, 1
      %p125 = por %p123, %p124
      %p126 = scmp.ne.s32.totalorder %s117, %s118
      %p127 = scmp.eq.s32.totalorder %s23, 0
      %p128 = por %p126, %p127
      %p129 = scmp.ne.s32.totalorder %s117, %s118
      %p130 = scmp.eq.s32.totalorder %s24, 1
      %p131 = por %p129, %p130
      %p133 = scmp.ne.s32.totalorder %s118, %s132
      %p134 = scmp.eq.s32.totalorder %s24, 0
      %p135 = por %p133, %p134
      %s136 = ssub.s32 %s18, %s25
      %p137 = scmp.eq.s32.totalorder %s136, 0
      %s139 = sadd.s32 %s138, 1
      %s140 = scalar_select %p137, %s138, %s139
      %p143 = pneg %p137
      %p144 = scmp.eq.s32.totalorder %s18, 1
      %p145 = por %p143, %p144
      %p146 = scmp.ne.s32.totalorder %s138, %s141
      %p147 = scmp.eq.s32.totalorder %s18, 0
      %p148 = por %p146, %p147
      %p149 = scmp.ne.s32.totalorder %s138, %s141
      %p150 = scmp.eq.s32.totalorder %s23, 1
      %p151 = por %p149, %p150
      %p152 = scmp.ne.s32.totalorder %s141, %s142
      %p153 = scmp.eq.s32.totalorder %s23, 0
      %p154 = por %p152, %p153
      %p155 = scmp.ne.s32.totalorder %s141, %s142
      %p156 = scmp.eq.s32.totalorder %s24, 1
      %p157 = por %p155, %p156
      %p159 = scmp.ne.s32.totalorder %s142, %s158
      %p160 = scmp.eq.s32.totalorder %s24, 0
      %p161 = por %p159, %p160
      %p162 = scmp.le.s32.totalorder 1, %s18
      %p163 = scmp.lt.s32.totalorder %s18, 3
      %p164 = pnand %p162, %p163
      %p165 = pneg %p164
      // Predicated region
      $region9: #{tpu_custom_call.1} parent=5 // pred_check
        _
      $region10: #{tpu_custom_call.1} parent=5 // pred_check_branch
        %167 = sbr.rel (%p164) target = $region12
      $region11: #{tpu_custom_call.1} parent=5 // pred_region
        %s168 = ssub.s32 %s18, 1
        // Predicated region
        $region13: #{tpu_custom_call.1} parent=11 // pred_check
          %p169 = pneg %p65
        $region14: #{tpu_custom_call.1} parent=11 // pred_check_branch
          %171 = sbr.rel (%p169) target = $region16
        $region15: #{tpu_custom_call.1} parent=11 // pred_region
          %s173 = ssub.s32 2048, 2048
          %174 = vsyncadd [#allocation7], %s173
          %s175 = sshll.u32 [#allocation6], 4
          %s176 = int_to_ptr.vmem [resolvable:$true] %s175
          %181 = dma.hbm_to_vmem [thread:$0]  %s1, 2048, %s176, [#allocation7], 128, 128, 8
        $region16: #{tpu_custom_call.1} parent=11 // pred_fallthru
          _
        // Predicated region
        $region17: #{tpu_custom_call.1} parent=11 // pred_check
          %p182 = pneg %p86
        $region18: #{tpu_custom_call.1} parent=11 // pred_check_branch
          %184 = sbr.rel (%p182) target = $region20
        $region19: #{tpu_custom_call.1} parent=11 // pred_region
          _
        $region20: #{tpu_custom_call.1} parent=11 // pred_fallthru
          _
        // Predicated region
        $region21: #{tpu_custom_call.1} parent=11 // pred_check
          %p185 = pneg %p107
        $region22: #{tpu_custom_call.1} parent=11 // pred_check_branch
          %187 = sbr.rel (%p185) target = $region24
        $region23: #{tpu_custom_call.1} parent=11 // pred_region
          %s189 = ssub.s32 2048, 2048
          %190 = vsyncadd [#allocation7], %s189
          %s191 = sshll.u32 [#allocation8], 4
          %s192 = int_to_ptr.vmem [resolvable:$true] %s191
          %197 = dma.hbm_to_vmem [thread:$0]  %s3, 2048, %s192, [#allocation7], 64, 64, 4
        $region24: #{tpu_custom_call.1} parent=11 // pred_fallthru
          _
        // Predicated region
        $region25: #{tpu_custom_call.1} parent=11 // pred_check
          %p198 = pneg %p128
        $region26: #{tpu_custom_call.1} parent=11 // pred_check_branch
          %200 = sbr.rel (%p198) target = $region28
        $region27: #{tpu_custom_call.1} parent=11 // pred_region
          _
        $region28: #{tpu_custom_call.1} parent=11 // pred_fallthru
          _
      $region12: #{tpu_custom_call.1} parent=5 // pred_fallthru
        _
      %p201 = scmp.lt.s32.totalorder %s18, 2
      // Predicated region
      $region29: #{tpu_custom_call.1} parent=5 // pred_check
        %p202 = pneg %p201
      $region30: #{tpu_custom_call.1} parent=5 // pred_check_branch
        %204 = sbr.rel (%p202) target = $region32
      $region31: #{tpu_custom_call.1} parent=5 // pred_region
        // Predicated region
        $region33: #{tpu_custom_call.1} parent=31 // pred_check
          %p205 = pneg %p38
        $region34: #{tpu_custom_call.1} parent=31 // pred_check_branch
          %207 = sbr.rel (%p205) target = $region36
        $region35: #{tpu_custom_call.1} parent=31 // pred_region
          %s208 = sand.u32 %s28, 1
          %s209 = scalar_lea.sflag [#allocation4], %s208
          %s210 = sand.u32 %s28, 1
          %s211 = smul.addr %s210, 32
          %s212 = scalar_lea.vmem [#allocation3], %s211
          %s213 = smul.u32 4, %s18
          %s215 = ssub.s32 512, 512
          %216 = vsyncadd %s209, %s215
          %s217 = smul.addr %s213, 128
          %s218 = scalar_lea.hbm %s0, %s217
          %s219 = sshll.u32 %s212, 4
          %s220 = int_to_ptr.vmem [resolvable:$true] %s219
          %225 = dma.hbm_to_vmem [thread:$0]  %s218, 512, %s220, %s209, 128, 128, 8
        $region36: #{tpu_custom_call.1} parent=31 // pred_fallthru
          _
      $region32: #{tpu_custom_call.1} parent=5 // pred_fallthru
        _
      %p226 = scmp.le.s32.totalorder 1, %s18
      %p227 = scmp.lt.s32.totalorder %s18, 3
      %p228 = pnand %p226, %p227
      %p229 = pneg %p228
      // Predicated region
      $region37: #{tpu_custom_call.1} parent=5 // pred_check
        _
      $region38: #{tpu_custom_call.1} parent=5 // pred_check_branch
        %231 = sbr.rel (%p228) target = $region40
      $region39: #{tpu_custom_call.1} parent=5 // pred_region
        %s232 = ssub.s32 %s18, 1
        %s233 = sand.u32 %s31, 1
        %s234 = scalar_lea.sflag [#allocation4], %s233
        %s235 = sand.u32 %s31, 1
        %s236 = smul.addr %s235, 32
        %s237 = scalar_lea.vmem [#allocation3], %s236
        // Predicated region
        $region41: #{tpu_custom_call.1} parent=39 // pred_check
          %p238 = pneg %p44
        $region42: #{tpu_custom_call.1} parent=39 // pred_check_branch
          %240 = sbr.rel (%p238) target = $region44
        $region43: #{tpu_custom_call.1} parent=39 // pred_region
          %241 = dma.done %s234, 512
        $region44: #{tpu_custom_call.1} parent=39 // pred_fallthru
          _
        // Predicated region
        $region45: #{tpu_custom_call.1} parent=39 // pred_check
          %p242 = pneg %p65
        $region46: #{tpu_custom_call.1} parent=39 // pred_check_branch
          %244 = sbr.rel (%p242) target = $region48
        $region47: #{tpu_custom_call.1} parent=39 // pred_region
          %245 = dma.done [#allocation7], 2048
        $region48: #{tpu_custom_call.1} parent=39 // pred_fallthru
          _
        // Predicated region
        $region49: #{tpu_custom_call.1} parent=39 // pred_check
          %p246 = pneg %p107
        $region50: #{tpu_custom_call.1} parent=39 // pred_check_branch
          %248 = sbr.rel (%p246) target = $region52
        $region51: #{tpu_custom_call.1} parent=39 // pred_region
          %249 = dma.done [#allocation7], 2048
        $region52: #{tpu_custom_call.1} parent=39 // pred_fallthru
          _
        %s250 = sand.u32 %s31, 1
        %s251 = scalar_lea.sflag [#allocation4], %s250
        %s252 = sand.u32 %s31, 1
        %s253 = smul.addr %s252, 32
        %s254 = scalar_lea.vmem [#allocation3], %s253
        %p255 = pneg %p44
        %p256 = pneg %p41
        %p257 = pneg %p65
        %p258 = pneg %p62
        %p259 = pneg %p86
        %p260 = pneg %p83
        %p261 = pneg %p107
        %p262 = pneg %p104
        %p263 = pneg %p128
        %p264 = pneg %p125
        %p265 = pneg %p154
        %p266 = pneg %p151
        %s267 = sand.u32 %s141, 1
        %s268 = scalar_lea.sflag [#allocation5], %s267
        %s269 = sand.u32 %s141, 1
        %s270 = smul.addr %s269, 32
        %s271 = scalar_lea.vmem [#allocation9], %s270
        %s272 = smul.u32 4, %s23
        %s273 = smul.u32 4, %s23
        %v275 = vld [vmem:[%s237] sm:$0xff]
        %v276 = vld [vmem:[%s237 + $0x8] sm:$0xff]
        %v277 = vld [vmem:[%s237 + $0x10] sm:$0xff]
        %v278 = vld [vmem:[%s237 + $0x18] sm:$0xff]
        %v279 = vpack.c.bf16 %v276, %v275
        %v280 = vpack.c.bf16 %v278, %v277
        %v281 = vld [vmem:[#allocation6] sm:$0xff]
        %v282 = vld [vmem:[#allocation6 + $0x8] sm:$0xff]
        %v283 = vld [vmem:[#allocation6 + $0x10] sm:$0xff]
        %v284 = vld [vmem:[#allocation6 + $0x18] sm:$0xff]
        %v285 = vld [vmem:[#allocation6 + $0x20] sm:$0xff]
        %v286 = vld [vmem:[#allocation6 + $0x28] sm:$0xff]
        %v287 = vld [vmem:[#allocation6 + $0x30] sm:$0xff]
        %v288 = vld [vmem:[#allocation6 + $0x38] sm:$0xff]
        %v289 = vld [vmem:[#allocation6 + $0x40] sm:$0xff]
        %v290 = vld [vmem:[#allocation6 + $0x48] sm:$0xff]
        %v291 = vld [vmem:[#allocation6 + $0x50] sm:$0xff]
        %v292 = vld [vmem:[#allocation6 + $0x58] sm:$0xff]
        %v293 = vld [vmem:[#allocation6 + $0x60] sm:$0xff]
        %v294 = vld [vmem:[#allocation6 + $0x68] sm:$0xff]
        %v295 = vld [vmem:[#allocation6 + $0x70] sm:$0xff]
        %v296 = vld [vmem:[#allocation6 + $0x78] sm:$0xff]
        %v297 = vld [vmem:[%s2] sm:$0x3]
        %v299 = vlaneseq
        %v300 = vshrl.u32 %v299, 7
        %v301 = vsub.s32 0, %v300
        %v302 = vrot.slane %v297, %v301
        %v303 = vlaneseq
        %v304 = vshrl.u32 %v303, 7
        %v305 = vsub.s32 1, %v304
        %v306 = vrot.slane %v297, %v305
        %v325 = vunpack.c.l.b16 %v281
        %v326 = vunpack.c.h.b16 %v281
        %v327 = vunpack.c.l.b16 %v282
        %v328 = vunpack.c.h.b16 %v282
        %v329 = vunpack.c.l.b16 %v283
        %v330 = vunpack.c.h.b16 %v283
        %v331 = vunpack.c.l.b16 %v284
        %v332 = vunpack.c.h.b16 %v284
        %v333 = vunpack.c.l.b16 %v285
        %v334 = vunpack.c.h.b16 %v285
        %v335 = vunpack.c.l.b16 %v286
        %v336 = vunpack.c.h.b16 %v286
        %v337 = vunpack.c.l.b16 %v287
        %v338 = vunpack.c.h.b16 %v287
        %v339 = vunpack.c.l.b16 %v288
        %v340 = vunpack.c.h.b16 %v288
        %v341 = vunpack.c.l.b16 %v289
        %v342 = vunpack.c.h.b16 %v289
        %v343 = vunpack.c.l.b16 %v290
        %v344 = vunpack.c.h.b16 %v290
        %v345 = vunpack.c.l.b16 %v291
        %v346 = vunpack.c.h.b16 %v291
        %v347 = vunpack.c.l.b16 %v292
        %v348 = vunpack.c.h.b16 %v292
        %v349 = vunpack.c.l.b16 %v293
        %v350 = vunpack.c.h.b16 %v293
        %v351 = vunpack.c.l.b16 %v294
        %v352 = vunpack.c.h.b16 %v294
        %v353 = vunpack.c.l.b16 %v295
        %v354 = vunpack.c.h.b16 %v295
        %v355 = vunpack.c.l.b16 %v296
        %v356 = vunpack.c.h.b16 %v296
        %v357 = vpack.c.b16 %v327, %v325
        %v358 = vpack.c.b16 %v328, %v326
        %v359 = vpack.c.b16 %v331, %v329
        %v360 = vpack.c.b16 %v332, %v330
        %v361 = vpack.c.b16 %v335, %v333
        %v362 = vpack.c.b16 %v336, %v334
        %v363 = vpack.c.b16 %v339, %v337
        %v364 = vpack.c.b16 %v340, %v338
        %v365 = vpack.c.b16 %v343, %v341
        %v366 = vpack.c.b16 %v344, %v342
        %v367 = vpack.c.b16 %v347, %v345
        %v368 = vpack.c.b16 %v348, %v346
        %v369 = vpack.c.b16 %v351, %v349
        %v370 = vpack.c.b16 %v352, %v350
        %v371 = vpack.c.b16 %v355, %v353
        %v372 = vpack.c.b16 %v356, %v354
        %389 = vmatprep.subr.bf16.mxu0 %v372
        %390 = vmatpush1.bf16.msra.mxu0 %v371
        %391 = vmatprep.subr.bf16.mxu0 %v370
        %392 = vmatpush1.bf16.msra.mxu0 %v369
        %393 = vmatprep.subr.bf16.mxu0 %v368
        %394 = vmatpush1.bf16.msra.mxu0 %v367
        %395 = vmatprep.subr.bf16.mxu0 %v366
        %396 = vmatpush1.bf16.msra.mxu0 %v365
        %397 = vmatprep.subr.bf16.mxu0 %v364
        %398 = vmatpush1.bf16.msra.mxu0 %v363
        %399 = vmatprep.subr.bf16.mxu0 %v362
        %400 = vmatpush1.bf16.msra.mxu0 %v361
        %401 = vmatprep.subr.bf16.mxu0 %v360
        %402 = vmatpush1.bf16.msra.mxu0 %v359
        %403 = vmatprep.subr.bf16.mxu0 %v358
        %404 = vmatpush1.bf16.msra.mxu0 %v357
        %405 = vmatprep.subr.bf16.mxu0 0
        %406 = vmatpush2.bf16.msra.mxu0 0
        %407 = vmatprep.subr.bf16.mxu0 0
        %408 = vmatpush2.bf16.msra.mxu0 0
        %409 = vmatprep.subr.bf16.mxu0 0
        %410 = vmatpush2.bf16.msra.mxu0 0
        %411 = vmatprep.subr.bf16.mxu0 0
        %412 = vmatpush2.bf16.msra.mxu0 0
        %413 = vmatprep.subr.bf16.mxu0 0
        %414 = vmatpush2.bf16.msra.mxu0 0
        %415 = vmatprep.subr.bf16.mxu0 0
        %416 = vmatpush2.bf16.msra.mxu0 0
        %417 = vmatprep.subr.bf16.mxu0 0
        %418 = vmatpush2.bf16.msra.mxu0 0
        %419 = vmatprep.subr.bf16.mxu0 0
        %420 = vmatpush2.bf16.msra.mxu0 0
        %421 = vmatprep.mubr.bf16.mxu0 0
        %422 = vmatmul.mubr.bf16.gmra.mxu0 %v279
        %v423 = vpop.f32.mrf.mxu0
        %v424 = vadd.f32 %v302, %v423
        %v425 = vpop.f32.mrf.mxu0
        %v426 = vadd.f32 %v306, %v425
        %v427 = vpop.f32.mrf.mxu0
        %v428 = vadd.f32 %v302, %v427
        %v429 = vpop.f32.mrf.mxu0
        %v430 = vadd.f32 %v306, %v429
        %431 = vmatprep.mubr.bf16.mxu0 0
        %432 = vmatmul.mubr.bf16.gmra.mxu0 %v280
        %v433 = vpop.f32.mrf.mxu0
        %v434 = vadd.f32 %v302, %v433
        %v435 = vpop.f32.mrf.mxu0
        %v436 = vadd.f32 %v306, %v435
        %v437 = vpop.f32.mrf.mxu0
        %v438 = vadd.f32 %v302, %v437
        %v439 = vpop.f32.mrf.mxu0
        %v440 = vadd.f32 %v306, %v439
        %441 = vdwg.mxu0
        %v442 = vsub.f32 0.0, %v424
        %v443 = vsub.f32 0.0, %v426
        %v444 = vsub.f32 0.0, %v428
        %v445 = vsub.f32 0.0, %v430
        %v446 = vsub.f32 0.0, %v434
        %v447 = vsub.f32 0.0, %v436
        %v448 = vsub.f32 0.0, %v438
        %v449 = vsub.f32 0.0, %v440
        %v450 = vmul.f32 %v442, 1.442695
        %v451 = vpow.pop %v450
        %v452 = vmul.f32 %v443, 1.442695
        %v453 = vpow.pop %v452
        %v454 = vmul.f32 %v444, 1.442695
        %v455 = vpow.pop %v454
        %v456 = vmul.f32 %v445, 1.442695
        %v457 = vpow.pop %v456
        %v458 = vmul.f32 %v446, 1.442695
        %v459 = vpow.pop %v458
        %v460 = vmul.f32 %v447, 1.442695
        %v461 = vpow.pop %v460
        %v462 = vmul.f32 %v448, 1.442695
        %v463 = vpow.pop %v462
        %v464 = vmul.f32 %v449, 1.442695
        %v465 = vpow.pop %v464
        %v466 = vadd.f32 %v451, 1.0
        %v467 = vadd.f32 %v453, 1.0
        %v468 = vadd.f32 %v455, 1.0
        %v469 = vadd.f32 %v457, 1.0
        %v470 = vadd.f32 %v459, 1.0
        %v471 = vadd.f32 %v461, 1.0
        %v472 = vadd.f32 %v463, 1.0
        %v473 = vadd.f32 %v465, 1.0
        %v474 = vrcp.pop %v466
        %v475 = vrcp.pop %v467
        %v476 = vrcp.pop %v468
        %v477 = vrcp.pop %v469
        %v478 = vrcp.pop %v470
        %v479 = vrcp.pop %v471
        %v480 = vrcp.pop %v472
        %v481 = vrcp.pop %v473
        %v482 = vmul.f32 %v424, %v474
        %v483 = vmul.f32 %v426, %v475
        %v484 = vmul.f32 %v428, %v476
        %v485 = vmul.f32 %v430, %v477
        %v486 = vmul.f32 %v434, %v478
        %v487 = vmul.f32 %v436, %v479
        %v488 = vmul.f32 %v438, %v480
        %v489 = vmul.f32 %v440, %v481
        %v490 = vpack.c.bf16 %v484, %v482
        %v491 = vpack.c.bf16 %v485, %v483
        %v492 = vpack.c.bf16 %v488, %v486
        %v493 = vpack.c.bf16 %v489, %v487
        %v494 = vld [vmem:[#allocation8] sm:$0xf]
        %v495 = vld [vmem:[#allocation8 + $0x4] sm:$0xf]
        %v496 = vld [vmem:[#allocation8 + $0x8] sm:$0xf]
        %v497 = vld [vmem:[#allocation8 + $0xc] sm:$0xf]
        %v498 = vld [vmem:[#allocation8 + $0x10] sm:$0xf]
        %v499 = vld [vmem:[#allocation8 + $0x14] sm:$0xf]
        %v500 = vld [vmem:[#allocation8 + $0x18] sm:$0xf]
        %v501 = vld [vmem:[#allocation8 + $0x1c] sm:$0xf]
        %v502 = vld [vmem:[#allocation8 + $0x20] sm:$0xf]
        %v503 = vld [vmem:[#allocation8 + $0x24] sm:$0xf]
        %v504 = vld [vmem:[#allocation8 + $0x28] sm:$0xf]
        %v505 = vld [vmem:[#allocation8 + $0x2c] sm:$0xf]
        %v506 = vld [vmem:[#allocation8 + $0x30] sm:$0xf]
        %v507 = vld [vmem:[#allocation8 + $0x34] sm:$0xf]
        %v508 = vld [vmem:[#allocation8 + $0x38] sm:$0xf]
        %v509 = vld [vmem:[#allocation8 + $0x3c] sm:$0xf]
        %v510 = vld [vmem:[#allocation8 + $0x40] sm:$0xf]
        %v511 = vld [vmem:[#allocation8 + $0x44] sm:$0xf]
        %v512 = vld [vmem:[#allocation8 + $0x48] sm:$0xf]
        %v513 = vld [vmem:[#allocation8 + $0x4c] sm:$0xf]
        %v514 = vld [vmem:[#allocation8 + $0x50] sm:$0xf]
        %v515 = vld [vmem:[#allocation8 + $0x54] sm:$0xf]
        %v516 = vld [vmem:[#allocation8 + $0x58] sm:$0xf]
        %v517 = vld [vmem:[#allocation8 + $0x5c] sm:$0xf]
        %v518 = vld [vmem:[#allocation8 + $0x60] sm:$0xf]
        %v519 = vld [vmem:[#allocation8 + $0x64] sm:$0xf]
        %v520 = vld [vmem:[#allocation8 + $0x68] sm:$0xf]
        %v521 = vld [vmem:[#allocation8 + $0x6c] sm:$0xf]
        %v522 = vld [vmem:[#allocation8 + $0x70] sm:$0xf]
        %v523 = vld [vmem:[#allocation8 + $0x74] sm:$0xf]
        %v524 = vld [vmem:[#allocation8 + $0x78] sm:$0xf]
        %v525 = vld [vmem:[#allocation8 + $0x7c] sm:$0xf]
        %v526 = vld [vmem:[%s4] sm:$0x1]
        %v528 = vlaneseq
        %v529 = vshrl.u32 %v528, 7
        %v530 = vsub.s32 0, %v529
        %v531 = vrot.slane %v526, %v530
        %v565 = vunpack.c.l.b16 %v494
        %v566 = vunpack.c.l.b16 %v495
        %v567 = vunpack.c.l.b16 %v496
        %v568 = vunpack.c.l.b16 %v497
        %v569 = vunpack.c.l.b16 %v498
        %v570 = vunpack.c.l.b16 %v499
        %v571 = vunpack.c.l.b16 %v500
        %v572 = vunpack.c.l.b16 %v501
        %v573 = vunpack.c.l.b16 %v502
        %v574 = vunpack.c.l.b16 %v503
        %v575 = vunpack.c.l.b16 %v504
        %v576 = vunpack.c.l.b16 %v505
        %v577 = vunpack.c.l.b16 %v506
        %v578 = vunpack.c.l.b16 %v507
        %v579 = vunpack.c.l.b16 %v508
        %v580 = vunpack.c.l.b16 %v509
        %v581 = vunpack.c.l.b16 %v510
        %v582 = vunpack.c.l.b16 %v511
        %v583 = vunpack.c.l.b16 %v512
        %v584 = vunpack.c.l.b16 %v513
        %v585 = vunpack.c.l.b16 %v514
        %v586 = vunpack.c.l.b16 %v515
        %v587 = vunpack.c.l.b16 %v516
        %v588 = vunpack.c.l.b16 %v517
        %v589 = vunpack.c.l.b16 %v518
        %v590 = vunpack.c.l.b16 %v519
        %v591 = vunpack.c.l.b16 %v520
        %v592 = vunpack.c.l.b16 %v521
        %v593 = vunpack.c.l.b16 %v522
        %v594 = vunpack.c.l.b16 %v523
        %v595 = vunpack.c.l.b16 %v524
        %v596 = vunpack.c.l.b16 %v525
        %v597 = vpack.c.b16 %v566, %v565
        %v598 = vpack.c.b16 %v568, %v567
        %v599 = vpack.c.b16 %v570, %v569
        %v600 = vpack.c.b16 %v572, %v571
        %v601 = vpack.c.b16 %v574, %v573
        %v602 = vpack.c.b16 %v576, %v575
        %v603 = vpack.c.b16 %v578, %v577
        %v604 = vpack.c.b16 %v580, %v579
        %v605 = vpack.c.b16 %v582, %v581
        %v606 = vpack.c.b16 %v584, %v583
        %v607 = vpack.c.b16 %v586, %v585
        %v608 = vpack.c.b16 %v588, %v587
        %v609 = vpack.c.b16 %v590, %v589
        %v610 = vpack.c.b16 %v592, %v591
        %v611 = vpack.c.b16 %v594, %v593
        %v612 = vpack.c.b16 %v596, %v595
        %629 = vmatprep.subr.bf16.mxu0 0
        %630 = vmatpush1.bf16.msra.mxu0 %v604
        %631 = vmatprep.subr.bf16.mxu0 0
        %632 = vmatpush1.bf16.msra.mxu0 %v603
        %633 = vmatprep.subr.bf16.mxu0 0
        %634 = vmatpush1.bf16.msra.mxu0 %v602
        %635 = vmatprep.subr.bf16.mxu0 0
        %636 = vmatpush1.bf16.msra.mxu0 %v601
        %637 = vmatprep.subr.bf16.mxu0 0
        %638 = vmatpush1.bf16.msra.mxu0 %v600
        %639 = vmatprep.subr.bf16.mxu0 0
        %640 = vmatpush1.bf16.msra.mxu0 %v599
        %641 = vmatprep.subr.bf16.mxu0 0
        %642 = vmatpush1.bf16.msra.mxu0 %v598
        %643 = vmatprep.subr.bf16.mxu0 0
        %644 = vmatpush1.bf16.msra.mxu0 %v597
        %645 = vmatprep.subr.bf16.mxu0 0
        %646 = vmatpush2.bf16.msra.mxu0 %v612
        %647 = vmatprep.subr.bf16.mxu0 0
        %648 = vmatpush2.bf16.msra.mxu0 %v611
        %649 = vmatprep.subr.bf16.mxu0 0
        %650 = vmatpush2.bf16.msra.mxu0 %v610
        %651 = vmatprep.subr.bf16.mxu0 0
        %652 = vmatpush2.bf16.msra.mxu0 %v609
        %653 = vmatprep.subr.bf16.mxu0 0
        %654 = vmatpush2.bf16.msra.mxu0 %v608
        %655 = vmatprep.subr.bf16.mxu0 0
        %656 = vmatpush2.bf16.msra.mxu0 %v607
        %657 = vmatprep.subr.bf16.mxu0 0
        %658 = vmatpush2.bf16.msra.mxu0 %v606
        %659 = vmatprep.subr.bf16.mxu0 0
        %660 = vmatpush2.bf16.msra.mxu0 %v605
        %661 = vmatprep.mubr.bf16.mxu0 %v491
        %662 = vmatmul.mubr.bf16.gmra.mxu0 %v490
        %v663 = vpop.f32.mrf.mxu0
        %v664 = vadd.f32 %v531, %v663
        %v665 = vpop.f32.mrf.mxu0
        %v666 = vpop.f32.mrf.mxu0
        %v667 = vadd.f32 %v531, %v666
        %v668 = vpop.f32.mrf.mxu0
        %669 = vmatprep.mubr.bf16.mxu0 %v493
        %670 = vmatmul.mubr.bf16.gmra.mxu0 %v492
        %v671 = vpop.f32.mrf.mxu0
        %v672 = vadd.f32 %v531, %v671
        %v673 = vpop.f32.mrf.mxu0
        %v674 = vpop.f32.mrf.mxu0
        %v675 = vadd.f32 %v531, %v674
        %v676 = vpop.f32.mrf.mxu0
        %677 = vdwg.mxu0
        %678 = vst [vmem:[%s271] sm:$0xff] %v664
        %679 = vst [vmem:[%s271 + $0x8] sm:$0xff] %v667
        %680 = vst [vmem:[%s271 + $0x10] sm:$0xff] %v672
        %681 = vst [vmem:[%s271 + $0x18] sm:$0xff] %v675
        %s682 = sand.u32 %s141, 1
        %s683 = scalar_lea.sflag [#allocation5], %s682
        %s684 = sand.u32 %s141, 1
        %s685 = smul.addr %s684, 32
        %s686 = scalar_lea.vmem [#allocation9], %s685
        // Predicated region
        $region53: #{tpu_custom_call.1} parent=39 // pred_check
          %p687 = pneg %p151
        $region54: #{tpu_custom_call.1} parent=39 // pred_check_branch
          %689 = sbr.rel (%p687) target = $region56
        $region55: #{tpu_custom_call.1} parent=39 // pred_region
          %s690 = smul.u32 4, %s23
          %s692 = ssub.s32 512, 512
          %693 = vsyncadd %s683, %s692
          %s694 = smul.addr %s690, 128
          %s695 = scalar_lea.hbm %s5, %s694
          %s696 = sshll.u32 %s686, 4
          %s697 = int_to_ptr.vmem [resolvable:$true] %s696
          %702 = dma.vmem_to_hbm [thread:$0]  %s697, 512, %s695, %s683, 128, 128, 8
        $region56: #{tpu_custom_call.1} parent=39 // pred_fallthru
          _
      $region40: #{tpu_custom_call.1} parent=5 // pred_fallthru
        _
      %p703 = scmp.le.s32.totalorder 2, %s18
      // Predicated region
      $region57: #{tpu_custom_call.1} parent=5 // pred_check
        %p704 = pneg %p703
      $region58: #{tpu_custom_call.1} parent=5 // pred_check_branch
        %706 = sbr.rel (%p704) target = $region60
      $region59: #{tpu_custom_call.1} parent=5 // pred_region
        %s707 = ssub.s32 %s18, 2
        // Predicated region
        $region61: #{tpu_custom_call.1} parent=59 // pred_check
          %p708 = pneg %p157
        $region62: #{tpu_custom_call.1} parent=59 // pred_check_branch
          %710 = sbr.rel (%p708) target = $region64
        $region63: #{tpu_custom_call.1} parent=59 // pred_region
          %s711 = sand.u32 %s142, 1
          %s712 = scalar_lea.sflag [#allocation5], %s711
          %s713 = sand.u32 %s142, 1
          %s714 = smul.addr %s713, 32
          %s715 = scalar_lea.vmem [#allocation9], %s714
          %716 = dma.done %s712, 512
        $region64: #{tpu_custom_call.1} parent=59 // pred_fallthru
          _
      $region60: #{tpu_custom_call.1} parent=5 // pred_fallthru
        _
    $region6: #{tpu_custom_call.1} parent=1 // loop_footer
      %s22 = sadd.s32 1, %s18
    $region7: #{tpu_custom_call.1} parent=1 // loop_footer_branch
      %17 = sbr.rel target = $region3
    $region8: #{tpu_custom_call.1} parent=1 // loop_exit
      _
    %717 = vsyncpa [#allocation4], 1
    %s718 = scalar_lea.sflag [#allocation4], 1
    %719 = vsyncpa %s718, 1
    %720 = vsyncpa [#allocation7], 1
    %721 = vsyncpa [#allocation5], 1
    %s722 = scalar_lea.sflag [#allocation5], 1
    %723 = vsyncpa %s722, 1

// kernel: tpu_custom_call.1
$region0: #{tpu_custom_call.1}
  #allocation0 [shape = 'u32[]', space=smem, size = 0x4, offset = 0x4, fixed_abs, tag = 'smem constant byte address 0x4 - core index']
  #allocation1 [shape = 'u32[144,128]{1,0:T(1,128)}', space=vmem, size = 0x12000, scoped, tag = 'internal scratch']
  #allocation2 [shape = 'f32[32,128]{1,0:T(8,128)}', space=vmem, size = 0x4000, scoped, tag = 'scratch operand']
  %s0 = inlined_call_operand.hbm [shape: f32[64,128], index: 0, kind: input, shape index: {}]
  %s1 = inlined_call_operand.hbm [shape: bf16[128,256], index: 1, kind: input, shape index: {}]
  %s2 = inlined_call_operand.vmem [shape: f32[1,256], index: 2, kind: input, shape index: {}]
  %s3 = inlined_call_operand.hbm [shape: bf16[256,128], index: 3, kind: input, shape index: {}]
  %s4 = inlined_call_operand.vmem [shape: f32[1,128], index: 4, kind: input, shape index: {}]
  %s5 = inlined_call_operand.hbm [shape: f32[64,128], index: 5, kind: output, shape index: {}]
  %s6 = sld [smem:[#allocation0]]
  $region65: #{tpu_custom_call.1} parent=0
    _
  %s8 = ssub.s32 1, %s6
  %s9 = scalar_select 0, %s8, %s6
  $region1: #{tpu_custom_call.1} parent=0
    #allocation3 [shape = 'u8[32768]{0}', space=vmem, size = 0x8000, scoped, tag = 'input window, operand 0']
    #allocation4 [shape = 's32[2]{0}', space=sflag, size = 0x8, scoped, tag = 'scoped memory for tpu_custom_call.1']
    #allocation5 [shape = 's32[2]{0}', space=sflag, size = 0x8, scoped, tag = 'scoped memory for tpu_custom_call.1']
    #allocation6 [shape = 'u8[65536]{0}', space=vmem, size = 0x10000, scoped, tag = 'input window, operand 1, single buffered']
    #allocation7 [shape = 's32[1]{0}', space=sflag, size = 0x4, scoped, tag = 'scoped memory for tpu_custom_call.1']
    #allocation8 [shape = 'u8[65536]{0}', space=vmem, size = 0x10000, scoped, tag = 'input window, operand 3, single buffered']
    #allocation9 [shape = 'u8[32768]{0}', space=vmem, size = 0x8000, scoped, tag = 'output window, operand 0']
    %10 = vsyncpa [#allocation4], 0
    %s11 = scalar_lea.sflag [#allocation4], 1
    %12 = vsyncpa %s11, 0
    %13 = vsyncpa [#allocation7], 0
    %14 = vsyncpa [#allocation5], 0
    %s15 = scalar_lea.sflag [#allocation5], 1
    %16 = vsyncpa %s15, 0
    loop: start=0, step=1, limit=4
    $region2: #{tpu_custom_call.1} parent=1 // loop_pre_header
      _
    $region3: #{tpu_custom_call.1} parent=1 // loop_header
      %s18 = sphi 0, %s22
      %p19 = scmp.ge.s32.totalorder %s18, 4
      %s28 = sphi 0, %s30
      %s31 = sphi 0, %s28
      %s32 = sphi 0, %s31
      %s48 = sphi 0, %s32
      %s52 = sphi 0, %s52
      %s54 = sphi 0, %s52
      %s55 = sphi 0, %s54
      %s69 = sphi 0, %s55
      %s73 = sphi 0, %s73
      %s75 = sphi 0, %s73
      %s76 = sphi 0, %s75
      %s90 = sphi 0, %s76
      %s94 = sphi 0, %s94
      %s96 = sphi 0, %s94
      %s97 = sphi 0, %s96
      %s111 = sphi 0, %s97
      %s115 = sphi 0, %s115
      %s117 = sphi 0, %s115
      %s118 = sphi 0, %s117
      %s132 = sphi 0, %s118
      %s138 = sphi 0, %s140
      %s141 = sphi 0, %s138
      %s142 = sphi 0, %s141
      %s158 = sphi 0, %s142
    $region4: #{tpu_custom_call.1} parent=1 // loop_header_branch
      %21 = sbr.rel (%p19) target = $region8
    $region5: #{tpu_custom_call.1} parent=1 // loop_body
      %s23 = ssub.s32 %s18, 1
      %s24 = ssub.s32 %s18, 2
      %s25 = sadd.s32 %s18, 1
      %s26 = ssub.s32 %s18, %s25
      %p27 = scmp.eq.s32.totalorder %s26, 0
      %s29 = sadd.s32 %s28, 1
      %s30 = scalar_select %p27, %s28, %s29
      %p33 = pneg %p27
      %p34 = scmp.eq.s32.totalorder %s18, 1
      %p35 = por %p33, %p34
      %p36 = scmp.ne.s32.totalorder %s28, %s31
      %p37 = scmp.eq.s32.totalorder %s18, 0
      %p38 = por %p36, %p37
      %p39 = scmp.ne.s32.totalorder %s28, %s31
      %p40 = scmp.eq.s32.totalorder %s23, 1
      %p41 = por %p39, %p40
      %p42 = scmp.ne.s32.totalorder %s31, %s32
      %p43 = scmp.eq.s32.totalorder %s23, 0
      %p44 = por %p42, %p43
      %p45 = scmp.ne.s32.totalorder %s31, %s32
      %p46 = scmp.eq.s32.totalorder %s24, 1
      %p47 = por %p45, %p46
      %p49 = scmp.ne.s32.totalorder %s32, %s48
      %p50 = scmp.eq.s32.totalorder %s24, 0
      %p51 = por %p49, %p50
      %s53 = sadd.s32 %s52, 1
      %p56 = scmp.eq.s32.totalorder %s18, 1
      %p57 = scmp.ne.s32.totalorder %s52, %s54
      %p58 = scmp.eq.s32.totalorder %s18, 0
      %p59 = por %p57, %p58
      %p60 = scmp.ne.s32.totalorder %s52, %s54
      %p61 = scmp.eq.s32.totalorder %s23, 1
      %p62 = por %p60, %p61
      %p63 = scmp.ne.s32.totalorder %s54, %s55
      %p64 = scmp.eq.s32.totalorder %s23, 0
      %p65 = por %p63, %p64
      %p66 = scmp.ne.s32.totalorder %s54, %s55
      %p67 = scmp.eq.s32.totalorder %s24, 1
      %p68 = por %p66, %p67
      %p70 = scmp.ne.s32.totalorder %s55, %s69
      %p71 = scmp.eq.s32.totalorder %s24, 0
      %p72 = por %p70, %p71
      %s74 = sadd.s32 %s73, 1
      %p77 = scmp.eq.s32.totalorder %s18, 1
      %p78 = scmp.ne.s32.totalorder %s73, %s75
      %p79 = scmp.eq.s32.totalorder %s18, 0
      %p80 = por %p78, %p79
      %p81 = scmp.ne.s32.totalorder %s73, %s75
      %p82 = scmp.eq.s32.totalorder %s23, 1
      %p83 = por %p81, %p82
      %p84 = scmp.ne.s32.totalorder %s75, %s76
      %p85 = scmp.eq.s32.totalorder %s23, 0
      %p86 = por %p84, %p85
      %p87 = scmp.ne.s32.totalorder %s75, %s76
      %p88 = scmp.eq.s32.totalorder %s24, 1
      %p89 = por %p87, %p88
      %p91 = scmp.ne.s32.totalorder %s76, %s90
      %p92 = scmp.eq.s32.totalorder %s24, 0
      %p93 = por %p91, %p92
      %s95 = sadd.s32 %s94, 1
      %p98 = scmp.eq.s32.totalorder %s18, 1
      %p99 = scmp.ne.s32.totalorder %s94, %s96
      %p100 = scmp.eq.s32.totalorder %s18, 0
      %p101 = por %p99, %p100
      %p102 = scmp.ne.s32.totalorder %s94, %s96
      %p103 = scmp.eq.s32.totalorder %s23, 1
      %p104 = por %p102, %p103
      %p105 = scmp.ne.s32.totalorder %s96, %s97
      %p106 = scmp.eq.s32.totalorder %s23, 0
      %p107 = por %p105, %p106
      %p108 = scmp.ne.s32.totalorder %s96, %s97
      %p109 = scmp.eq.s32.totalorder %s24, 1
      %p110 = por %p108, %p109
      %p112 = scmp.ne.s32.totalorder %s97, %s111
      %p113 = scmp.eq.s32.totalorder %s24, 0
      %p114 = por %p112, %p113
      %s116 = sadd.s32 %s115, 1
      %p119 = scmp.eq.s32.totalorder %s18, 1
      %p120 = scmp.ne.s32.totalorder %s115, %s117
      %p121 = scmp.eq.s32.totalorder %s18, 0
      %p122 = por %p120, %p121
      %p123 = scmp.ne.s32.totalorder %s115, %s117
      %p124 = scmp.eq.s32.totalorder %s23, 1
      %p125 = por %p123, %p124
      %p126 = scmp.ne.s32.totalorder %s117, %s118
      %p127 = scmp.eq.s32.totalorder %s23, 0
      %p128 = por %p126, %p127
      %p129 = scmp.ne.s32.totalorder %s117, %s118
      %p130 = scmp.eq.s32.totalorder %s24, 1
      %p131 = por %p129, %p130
      %p133 = scmp.ne.s32.totalorder %s118, %s132
      %p134 = scmp.eq.s32.totalorder %s24, 0
      %p135 = por %p133, %p134
      %s136 = ssub.s32 %s18, %s25
      %p137 = scmp.eq.s32.totalorder %s136, 0
      %s139 = sadd.s32 %s138, 1
      %s140 = scalar_select %p137, %s138, %s139
      %p143 = pneg %p137
      %p144 = scmp.eq.s32.totalorder %s18, 1
      %p145 = por %p143, %p144
      %p146 = scmp.ne.s32.totalorder %s138, %s141
      %p147 = scmp.eq.s32.totalorder %s18, 0
      %p148 = por %p146, %p147
      %p149 = scmp.ne.s32.totalorder %s138, %s141
      %p150 = scmp.eq.s32.totalorder %s23, 1
      %p151 = por %p149, %p150
      %p152 = scmp.ne.s32.totalorder %s141, %s142
      %p153 = scmp.eq.s32.totalorder %s23, 0
      %p154 = por %p152, %p153
      %p155 = scmp.ne.s32.totalorder %s141, %s142
      %p156 = scmp.eq.s32.totalorder %s24, 1
      %p157 = por %p155, %p156
      %p159 = scmp.ne.s32.totalorder %s142, %s158
      %p160 = scmp.eq.s32.totalorder %s24, 0
      %p161 = por %p159, %p160
      %p162 = scmp.le.s32.totalorder 1, %s18
      %p163 = scmp.lt.s32.totalorder %s18, 3
      %p164 = pnand %p162, %p163
      %p165 = pneg %p164
      // Predicated region
      $region9: #{tpu_custom_call.1} parent=5 // pred_check
        _
      $region10: #{tpu_custom_call.1} parent=5 // pred_check_branch
        %167 = sbr.rel (%p164) target = $region12
      $region11: #{tpu_custom_call.1} parent=5 // pred_region
        %s168 = ssub.s32 %s18, 1
        // Predicated region
        $region13: #{tpu_custom_call.1} parent=11 // pred_check
          %p169 = pneg %p65
        $region14: #{tpu_custom_call.1} parent=11 // pred_check_branch
          %171 = sbr.rel (%p169) target = $region16
        $region15: #{tpu_custom_call.1} parent=11 // pred_region
          %s173 = ssub.s32 2048, 2048
          %174 = vsyncadd [#allocation7], %s173
          %s175 = sshll.u32 [#allocation6], 4
          %s176 = int_to_ptr.vmem [resolvable:$true] %s175
          %181 = dma.hbm_to_vmem [thread:$0]  %s1, 2048, %s176, [#allocation7], 128, 128, 8
        $region16: #{tpu_custom_call.1} parent=11 // pred_fallthru
          _
        // Predicated region
        $region17: #{tpu_custom_call.1} parent=11 // pred_check
          %p182 = pneg %p86
        $region18: #{tpu_custom_call.1} parent=11 // pred_check_branch
          %184 = sbr.rel (%p182) target = $region20
        $region19: #{tpu_custom_call.1} parent=11 // pred_region
          _
        $region20: #{tpu_custom_call.1} parent=11 // pred_fallthru
          _
        // Predicated region
        $region21: #{tpu_custom_call.1} parent=11 // pred_check
          %p185 = pneg %p107
        $region22: #{tpu_custom_call.1} parent=11 // pred_check_branch
          %187 = sbr.rel (%p185) target = $region24
        $region23: #{tpu_custom_call.1} parent=11 // pred_region
          %s189 = ssub.s32 2048, 2048
          %190 = vsyncadd [#allocation7], %s189
          %s191 = sshll.u32 [#allocation8], 4
          %s192 = int_to_ptr.vmem [resolvable:$true] %s191
          %197 = dma.hbm_to_vmem [thread:$0]  %s3, 2048, %s192, [#allocation7], 64, 64, 4
        $region24: #{tpu_custom_call.1} parent=11 // pred_fallthru
          _
        // Predicated region
        $region25: #{tpu_custom_call.1} parent=11 // pred_check
          %p198 = pneg %p128
        $region26: #{tpu_custom_call.1} parent=11 // pred_check_branch
          %200 = sbr.rel (%p198) target = $region28
        $region27: #{tpu_custom_call.1} parent=11 // pred_region
          _
        $region28: #{tpu_custom_call.1} parent=11 // pred_fallthru
          _
      $region12: #{tpu_custom_call.1} parent=5 // pred_fallthru
        _
      %p201 = scmp.lt.s32.totalorder %s18, 2
      // Predicated region
      $region29: #{tpu_custom_call.1} parent=5 // pred_check
        %p202 = pneg %p201
      $region30: #{tpu_custom_call.1} parent=5 // pred_check_branch
        %204 = sbr.rel (%p202) target = $region32
      $region31: #{tpu_custom_call.1} parent=5 // pred_region
        // Predicated region
        $region33: #{tpu_custom_call.1} parent=31 // pred_check
          %p205 = pneg %p38
        $region34: #{tpu_custom_call.1} parent=31 // pred_check_branch
          %207 = sbr.rel (%p205) target = $region36
        $region35: #{tpu_custom_call.1} parent=31 // pred_region
          %s208 = sand.u32 %s28, 1
          %s209 = scalar_lea.sflag [#allocation4], %s208
          %s210 = sand.u32 %s28, 1
          %s211 = smul.addr %s210, 32
          %s212 = scalar_lea.vmem [#allocation3], %s211
          %s213 = smul.u32 4, %s18
          %s215 = ssub.s32 512, 512
          %216 = vsyncadd %s209, %s215
          %s217 = smul.addr %s213, 128
          %s218 = scalar_lea.hbm %s0, %s217
          %s219 = sshll.u32 %s212, 4
          %s220 = int_to_ptr.vmem [resolvable:$true] %s219
          %225 = dma.hbm_to_vmem [thread:$0]  %s218, 512, %s220, %s209, 128, 128, 8
        $region36: #{tpu_custom_call.1} parent=31 // pred_fallthru
          _
      $region32: #{tpu_custom_call.1} parent=5 // pred_fallthru
        _
      %p226 = scmp.le.s32.totalorder 1, %s18
      %p227 = scmp.lt.s32.totalorder %s18, 3
      %p228 = pnand %p226, %p227
      %p229 = pneg %p228
      // Predicated region
      $region37: #{tpu_custom_call.1} parent=5 // pred_check
        _
      $region38: #{tpu_custom_call.1} parent=5 // pred_check_branch
        %231 = sbr.rel (%p228) target = $region40
      $region39: #{tpu_custom_call.1} parent=5 // pred_region
        %s232 = ssub.s32 %s18, 1
        %s233 = sand.u32 %s31, 1
        %s234 = scalar_lea.sflag [#allocation4], %s233
        %s235 = sand.u32 %s31, 1
        %s236 = smul.addr %s235, 32
        %s237 = scalar_lea.vmem [#allocation3], %s236
        // Predicated region
        $region41: #{tpu_custom_call.1} parent=39 // pred_check
          %p238 = pneg %p44
        $region42: #{tpu_custom_call.1} parent=39 // pred_check_branch
          %240 = sbr.rel (%p238) target = $region44
        $region43: #{tpu_custom_call.1} parent=39 // pred_region
          %241 = dma.done %s234, 512
        $region44: #{tpu_custom_call.1} parent=39 // pred_fallthru
          _
        // Predicated region
        $region45: #{tpu_custom_call.1} parent=39 // pred_check
          %p242 = pneg %p65
        $region46: #{tpu_custom_call.1} parent=39 // pred_check_branch
          %244 = sbr.rel (%p242) target = $region48
        $region47: #{tpu_custom_call.1} parent=39 // pred_region
          %245 = dma.done [#allocation7], 2048
        $region48: #{tpu_custom_call.1} parent=39 // pred_fallthru
          _
        // Predicated region
        $region49: #{tpu_custom_call.1} parent=39 // pred_check
          %p246 = pneg %p107
        $region50: #{tpu_custom_call.1} parent=39 // pred_check_branch
          %248 = sbr.rel (%p246) target = $region52
        $region51: #{tpu_custom_call.1} parent=39 // pred_region
          %249 = dma.done [#allocation7], 2048
        $region52: #{tpu_custom_call.1} parent=39 // pred_fallthru
          _
        %s250 = sand.u32 %s31, 1
        %s251 = scalar_lea.sflag [#allocation4], %s250
        %s252 = sand.u32 %s31, 1
        %s253 = smul.addr %s252, 32
        %s254 = scalar_lea.vmem [#allocation3], %s253
        %p255 = pneg %p44
        %p256 = pneg %p41
        %p257 = pneg %p65
        %p258 = pneg %p62
        %p259 = pneg %p86
        %p260 = pneg %p83
        %p261 = pneg %p107
        %p262 = pneg %p104
        %p263 = pneg %p128
        %p264 = pneg %p125
        %p265 = pneg %p154
        %p266 = pneg %p151
        %s267 = sand.u32 %s141, 1
        %s268 = scalar_lea.sflag [#allocation5], %s267
        %s269 = sand.u32 %s141, 1
        %s270 = smul.addr %s269, 32
        %s271 = scalar_lea.vmem [#allocation9], %s270
        %s272 = smul.u32 4, %s23
        %s273 = smul.u32 4, %s23
        %v275 = vld [vmem:[%s237] sm:$0xff]
        %v276 = vld [vmem:[%s237 + $0x8] sm:$0xff]
        %v277 = vld [vmem:[%s237 + $0x10] sm:$0xff]
        %v278 = vld [vmem:[%s237 + $0x18] sm:$0xff]
        %v279 = vpack.c.bf16 %v276, %v275
        %v280 = vpack.c.bf16 %v278, %v277
        %v281 = vld [vmem:[#allocation6] sm:$0xff]
        %v282 = vld [vmem:[#allocation6 + $0x8] sm:$0xff]
        %v283 = vld [vmem:[#allocation6 + $0x10] sm:$0xff]
        %v284 = vld [vmem:[#allocation6 + $0x18] sm:$0xff]
        %v285 = vld [vmem:[#allocation6 + $0x20] sm:$0xff]
        %v286 = vld [vmem:[#allocation6 + $0x28] sm:$0xff]
        %v287 = vld [vmem:[#allocation6 + $0x30] sm:$0xff]
        %v288 = vld [vmem:[#allocation6 + $0x38] sm:$0xff]
        %v289 = vld [vmem:[#allocation6 + $0x40] sm:$0xff]
        %v290 = vld [vmem:[#allocation6 + $0x48] sm:$0xff]
        %v291 = vld [vmem:[#allocation6 + $0x50] sm:$0xff]
        %v292 = vld [vmem:[#allocation6 + $0x58] sm:$0xff]
        %v293 = vld [vmem:[#allocation6 + $0x60] sm:$0xff]
        %v294 = vld [vmem:[#allocation6 + $0x68] sm:$0xff]
        %v295 = vld [vmem:[#allocation6 + $0x70] sm:$0xff]
        %v296 = vld [vmem:[#allocation6 + $0x78] sm:$0xff]
        %v297 = vld [vmem:[%s2] sm:$0x3]
        %v299 = vlaneseq
        %v300 = vshrl.u32 %v299, 7
        %v301 = vsub.s32 0, %v300
        %v302 = vrot.slane %v297, %v301
        %v303 = vlaneseq
        %v304 = vshrl.u32 %v303, 7
        %v305 = vsub.s32 1, %v304
        %v306 = vrot.slane %v297, %v305
        %v325 = vunpack.c.l.b16 %v281
        %v326 = vunpack.c.h.b16 %v281
        %v327 = vunpack.c.l.b16 %v282
        %v328 = vunpack.c.h.b16 %v282
        %v329 = vunpack.c.l.b16 %v283
        %v330 = vunpack.c.h.b16 %v283
        %v331 = vunpack.c.l.b16 %v284
        %v332 = vunpack.c.h.b16 %v284
        %v333 = vunpack.c.l.b16 %v285
        %v334 = vunpack.c.h.b16 %v285
        %v335 = vunpack.c.l.b16 %v286
        %v336 = vunpack.c.h.b16 %v286
        %v337 = vunpack.c.l.b16 %v287
        %v338 = vunpack.c.h.b16 %v287
        %v339 = vunpack.c.l.b16 %v288
        %v340 = vunpack.c.h.b16 %v288
        %v341 = vunpack.c.l.b16 %v289
        %v342 = vunpack.c.h.b16 %v289
        %v343 = vunpack.c.l.b16 %v290
        %v344 = vunpack.c.h.b16 %v290
        %v345 = vunpack.c.l.b16 %v291
        %v346 = vunpack.c.h.b16 %v291
        %v347 = vunpack.c.l.b16 %v292
        %v348 = vunpack.c.h.b16 %v292
        %v349 = vunpack.c.l.b16 %v293
        %v350 = vunpack.c.h.b16 %v293
        %v351 = vunpack.c.l.b16 %v294
        %v352 = vunpack.c.h.b16 %v294
        %v353 = vunpack.c.l.b16 %v295
        %v354 = vunpack.c.h.b16 %v295
        %v355 = vunpack.c.l.b16 %v296
        %v356 = vunpack.c.h.b16 %v296
        %v357 = vpack.c.b16 %v327, %v325
        %v358 = vpack.c.b16 %v328, %v326
        %v359 = vpack.c.b16 %v331, %v329
        %v360 = vpack.c.b16 %v332, %v330
        %v361 = vpack.c.b16 %v335, %v333
        %v362 = vpack.c.b16 %v336, %v334
        %v363 = vpack.c.b16 %v339, %v337
        %v364 = vpack.c.b16 %v340, %v338
        %v365 = vpack.c.b16 %v343, %v341
        %v366 = vpack.c.b16 %v344, %v342
        %v367 = vpack.c.b16 %v347, %v345
        %v368 = vpack.c.b16 %v348, %v346
        %v369 = vpack.c.b16 %v351, %v349
        %v370 = vpack.c.b16 %v352, %v350
        %v371 = vpack.c.b16 %v355, %v353
        %v372 = vpack.c.b16 %v356, %v354
        %389 = vmatprep.subr.bf16.mxu0 %v372
        %390 = vmatpush1.bf16.msra.mxu0 %v371
        %391 = vmatprep.subr.bf16.mxu0 %v370
        %392 = vmatpush1.bf16.msra.mxu0 %v369
        %393 = vmatprep.subr.bf16.mxu0 %v368
        %394 = vmatpush1.bf16.msra.mxu0 %v367
        %395 = vmatprep.subr.bf16.mxu0 %v366
        %396 = vmatpush1.bf16.msra.mxu0 %v365
        %397 = vmatprep.subr.bf16.mxu0 %v364
        %398 = vmatpush1.bf16.msra.mxu0 %v363
        %399 = vmatprep.subr.bf16.mxu0 %v362
        %400 = vmatpush1.bf16.msra.mxu0 %v361
        %401 = vmatprep.subr.bf16.mxu0 %v360
        %402 = vmatpush1.bf16.msra.mxu0 %v359
        %403 = vmatprep.subr.bf16.mxu0 %v358
        %404 = vmatpush1.bf16.msra.mxu0 %v357
        %405 = vmatprep.subr.bf16.mxu0 0
        %406 = vmatpush2.bf16.msra.mxu0 0
        %407 = vmatprep.subr.bf16.mxu0 0
        %408 = vmatpush2.bf16.msra.mxu0 0
        %409 = vmatprep.subr.bf16.mxu0 0
        %410 = vmatpush2.bf16.msra.mxu0 0
        %411 = vmatprep.subr.bf16.mxu0 0
        %412 = vmatpush2.bf16.msra.mxu0 0
        %413 = vmatprep.subr.bf16.mxu0 0
        %414 = vmatpush2.bf16.msra.mxu0 0
        %415 = vmatprep.subr.bf16.mxu0 0
        %416 = vmatpush2.bf16.msra.mxu0 0
        %417 = vmatprep.subr.bf16.mxu0 0
        %418 = vmatpush2.bf16.msra.mxu0 0
        %419 = vmatprep.subr.bf16.mxu0 0
        %420 = vmatpush2.bf16.msra.mxu0 0
        %421 = vmatprep.mubr.bf16.mxu0 0
        %422 = vmatmul.mubr.bf16.gmra.mxu0 %v279
        %v423 = vpop.f32.mrf.mxu0
        %v424 = vadd.f32 %v302, %v423
        %v425 = vpop.f32.mrf.mxu0
        %v426 = vadd.f32 %v306, %v425
        %v427 = vpop.f32.mrf.mxu0
        %v428 = vadd.f32 %v302, %v427
        %v429 = vpop.f32.mrf.mxu0
        %v430 = vadd.f32 %v306, %v429
        %431 = vmatprep.mubr.bf16.mxu0 0
        %432 = vmatmul.mubr.bf16.gmra.mxu0 %v280
        %v433 = vpop.f32.mrf.mxu0
        %v434 = vadd.f32 %v302, %v433
        %v435 = vpop.f32.mrf.mxu0
        %v436 = vadd.f32 %v306, %v435
        %v437 = vpop.f32.mrf.mxu0
        %v438 = vadd.f32 %v302, %v437
        %v439 = vpop.f32.mrf.mxu0
        %v440 = vadd.f32 %v306, %v439
        %441 = vdwg.mxu0
        %v442 = vsub.f32 0.0, %v424
        %v443 = vsub.f32 0.0, %v426
        %v444 = vsub.f32 0.0, %v428
        %v445 = vsub.f32 0.0, %v430
        %v446 = vsub.f32 0.0, %v434
        %v447 = vsub.f32 0.0, %v436
        %v448 = vsub.f32 0.0, %v438
        %v449 = vsub.f32 0.0, %v440
        %v450 = vmul.f32 %v442, 1.442695
        %v451 = vpow.pop %v450
        %v452 = vmul.f32 %v443, 1.442695
        %v453 = vpow.pop %v452
        %v454 = vmul.f32 %v444, 1.442695
        %v455 = vpow.pop %v454
        %v456 = vmul.f32 %v445, 1.442695
        %v457 = vpow.pop %v456
        %v458 = vmul.f32 %v446, 1.442695
        %v459 = vpow.pop %v458
        %v460 = vmul.f32 %v447, 1.442695
        %v461 = vpow.pop %v460
        %v462 = vmul.f32 %v448, 1.442695
        %v463 = vpow.pop %v462
        %v464 = vmul.f32 %v449, 1.442695
        %v465 = vpow.pop %v464
        %v466 = vadd.f32 %v451, 1.0
        %v467 = vadd.f32 %v453, 1.0
        %v468 = vadd.f32 %v455, 1.0
        %v469 = vadd.f32 %v457, 1.0
        %v470 = vadd.f32 %v459, 1.0
        %v471 = vadd.f32 %v461, 1.0
        %v472 = vadd.f32 %v463, 1.0
        %v473 = vadd.f32 %v465, 1.0
        %v474 = vrcp.pop %v466
        %v475 = vrcp.pop %v467
        %v476 = vrcp.pop %v468
        %v477 = vrcp.pop %v469
        %v478 = vrcp.pop %v470
        %v479 = vrcp.pop %v471
        %v480 = vrcp.pop %v472
        %v481 = vrcp.pop %v473
        %v482 = vmul.f32 %v424, %v474
        %v483 = vmul.f32 %v426, %v475
        %v484 = vmul.f32 %v428, %v476
        %v485 = vmul.f32 %v430, %v477
        %v486 = vmul.f32 %v434, %v478
        %v487 = vmul.f32 %v436, %v479
        %v488 = vmul.f32 %v438, %v480
        %v489 = vmul.f32 %v440, %v481
        %v490 = vpack.c.bf16 %v484, %v482
        %v491 = vpack.c.bf16 %v485, %v483
        %v492 = vpack.c.bf16 %v488, %v486
        %v493 = vpack.c.bf16 %v489, %v487
        %v494 = vld [vmem:[#allocation8] sm:$0xf]
        %v495 = vld [vmem:[#allocation8 + $0x4] sm:$0xf]
        %v496 = vld [vmem:[#allocation8 + $0x8] sm:$0xf]
        %v497 = vld [vmem:[#allocation8 + $0xc] sm:$0xf]
        %v498 = vld [vmem:[#allocation8 + $0x10] sm:$0xf]
        %v499 = vld [vmem:[#allocation8 + $0x14] sm:$0xf]
        %v500 = vld [vmem:[#allocation8 + $0x18] sm:$0xf]
        %v501 = vld [vmem:[#allocation8 + $0x1c] sm:$0xf]
        %v502 = vld [vmem:[#allocation8 + $0x20] sm:$0xf]
        %v503 = vld [vmem:[#allocation8 + $0x24] sm:$0xf]
        %v504 = vld [vmem:[#allocation8 + $0x28] sm:$0xf]
        %v505 = vld [vmem:[#allocation8 + $0x2c] sm:$0xf]
        %v506 = vld [vmem:[#allocation8 + $0x30] sm:$0xf]
        %v507 = vld [vmem:[#allocation8 + $0x34] sm:$0xf]
        %v508 = vld [vmem:[#allocation8 + $0x38] sm:$0xf]
        %v509 = vld [vmem:[#allocation8 + $0x3c] sm:$0xf]
        %v510 = vld [vmem:[#allocation8 + $0x40] sm:$0xf]
        %v511 = vld [vmem:[#allocation8 + $0x44] sm:$0xf]
        %v512 = vld [vmem:[#allocation8 + $0x48] sm:$0xf]
        %v513 = vld [vmem:[#allocation8 + $0x4c] sm:$0xf]
        %v514 = vld [vmem:[#allocation8 + $0x50] sm:$0xf]
        %v515 = vld [vmem:[#allocation8 + $0x54] sm:$0xf]
        %v516 = vld [vmem:[#allocation8 + $0x58] sm:$0xf]
        %v517 = vld [vmem:[#allocation8 + $0x5c] sm:$0xf]
        %v518 = vld [vmem:[#allocation8 + $0x60] sm:$0xf]
        %v519 = vld [vmem:[#allocation8 + $0x64] sm:$0xf]
        %v520 = vld [vmem:[#allocation8 + $0x68] sm:$0xf]
        %v521 = vld [vmem:[#allocation8 + $0x6c] sm:$0xf]
        %v522 = vld [vmem:[#allocation8 + $0x70] sm:$0xf]
        %v523 = vld [vmem:[#allocation8 + $0x74] sm:$0xf]
        %v524 = vld [vmem:[#allocation8 + $0x78] sm:$0xf]
        %v525 = vld [vmem:[#allocation8 + $0x7c] sm:$0xf]
        %v526 = vld [vmem:[%s4] sm:$0x1]
        %v528 = vlaneseq
        %v529 = vshrl.u32 %v528, 7
        %v530 = vsub.s32 0, %v529
        %v531 = vrot.slane %v526, %v530
        %v565 = vunpack.c.l.b16 %v494
        %v566 = vunpack.c.l.b16 %v495
        %v567 = vunpack.c.l.b16 %v496
        %v568 = vunpack.c.l.b16 %v497
        %v569 = vunpack.c.l.b16 %v498
        %v570 = vunpack.c.l.b16 %v499
        %v571 = vunpack.c.l.b16 %v500
        %v572 = vunpack.c.l.b16 %v501
        %v573 = vunpack.c.l.b16 %v502
        %v574 = vunpack.c.l.b16 %v503
        %v575 = vunpack.c.l.b16 %v504
        %v576 = vunpack.c.l.b16 %v505
        %v577 = vunpack.c.l.b16 %v506
        %v578 = vunpack.c.l.b16 %v507
        %v579 = vunpack.c.l.b16 %v508
        %v580 = vunpack.c.l.b16 %v509
        %v581 = vunpack.c.l.b16 %v510
        %v582 = vunpack.c.l.b16 %v511
        %v583 = vunpack.c.l.b16 %v512
        %v584 = vunpack.c.l.b16 %v513
        %v585 = vunpack.c.l.b16 %v514
        %v586 = vunpack.c.l.b16 %v515
        %v587 = vunpack.c.l.b16 %v516
        %v588 = vunpack.c.l.b16 %v517
        %v589 = vunpack.c.l.b16 %v518
        %v590 = vunpack.c.l.b16 %v519
        %v591 = vunpack.c.l.b16 %v520
        %v592 = vunpack.c.l.b16 %v521
        %v593 = vunpack.c.l.b16 %v522
        %v594 = vunpack.c.l.b16 %v523
        %v595 = vunpack.c.l.b16 %v524
        %v596 = vunpack.c.l.b16 %v525
        %v597 = vpack.c.b16 %v566, %v565
        %v598 = vpack.c.b16 %v568, %v567
        %v599 = vpack.c.b16 %v570, %v569
        %v600 = vpack.c.b16 %v572, %v571
        %v601 = vpack.c.b16 %v574, %v573
        %v602 = vpack.c.b16 %v576, %v575
        %v603 = vpack.c.b16 %v578, %v577
        %v604 = vpack.c.b16 %v580, %v579
        %v605 = vpack.c.b16 %v582, %v581
        %v606 = vpack.c.b16 %v584, %v583
        %v607 = vpack.c.b16 %v586, %v585
        %v608 = vpack.c.b16 %v588, %v587
        %v609 = vpack.c.b16 %v590, %v589
        %v610 = vpack.c.b16 %v592, %v591
        %v611 = vpack.c.b16 %v594, %v593
        %v612 = vpack.c.b16 %v596, %v595
        %629 = vmatprep.subr.bf16.mxu0 0
        %630 = vmatpush1.bf16.msra.mxu0 %v604
        %631 = vmatprep.subr.bf16.mxu0 0
        %632 = vmatpush1.bf16.msra.mxu0 %v603
        %633 = vmatprep.subr.bf16.mxu0 0
        %634 = vmatpush1.bf16.msra.mxu0 %v602
        %635 = vmatprep.subr.bf16.mxu0 0
        %636 = vmatpush1.bf16.msra.mxu0 %v601
        %637 = vmatprep.subr.bf16.mxu0 0
        %638 = vmatpush1.bf16.msra.mxu0 %v600
        %639 = vmatprep.subr.bf16.mxu0 0
        %640 = vmatpush1.bf16.msra.mxu0 %v599
        %641 = vmatprep.subr.bf16.mxu0 0
        %642 = vmatpush1.bf16.msra.mxu0 %v598
        %643 = vmatprep.subr.bf16.mxu0 0
        %644 = vmatpush1.bf16.msra.mxu0 %v597
        %645 = vmatprep.subr.bf16.mxu0 0
        %646 = vmatpush2.bf16.msra.mxu0 %v612
        %647 = vmatprep.subr.bf16.mxu0 0
        %648 = vmatpush2.bf16.msra.mxu0 %v611
        %649 = vmatprep.subr.bf16.mxu0 0
        %650 = vmatpush2.bf16.msra.mxu0 %v610
        %651 = vmatprep.subr.bf16.mxu0 0
        %652 = vmatpush2.bf16.msra.mxu0 %v609
        %653 = vmatprep.subr.bf16.mxu0 0
        %654 = vmatpush2.bf16.msra.mxu0 %v608
        %655 = vmatprep.subr.bf16.mxu0 0
        %656 = vmatpush2.bf16.msra.mxu0 %v607
        %657 = vmatprep.subr.bf16.mxu0 0
        %658 = vmatpush2.bf16.msra.mxu0 %v606
        %659 = vmatprep.subr.bf16.mxu0 0
        %660 = vmatpush2.bf16.msra.mxu0 %v605
        %661 = vmatprep.mubr.bf16.mxu0 %v491
        %662 = vmatmul.mubr.bf16.gmra.mxu0 %v490
        %v663 = vpop.f32.mrf.mxu0
        %v664 = vadd.f32 %v531, %v663
        %v665 = vpop.f32.mrf.mxu0
        %v666 = vpop.f32.mrf.mxu0
        %v667 = vadd.f32 %v531, %v666
        %v668 = vpop.f32.mrf.mxu0
        %669 = vmatprep.mubr.bf16.mxu0 %v493
        %670 = vmatmul.mubr.bf16.gmra.mxu0 %v492
        %v671 = vpop.f32.mrf.mxu0
        %v672 = vadd.f32 %v531, %v671
        %v673 = vpop.f32.mrf.mxu0
        %v674 = vpop.f32.mrf.mxu0
        %v675 = vadd.f32 %v531, %v674
        %v676 = vpop.f32.mrf.mxu0
        %677 = vdwg.mxu0
        %678 = vst [vmem:[%s271] sm:$0xff] %v664
        %679 = vst [vmem:[%s271 + $0x8] sm:$0xff] %v667
        %680 = vst [vmem:[%s271 + $0x10] sm:$0xff] %v672
        %681 = vst [vmem:[%s271 + $0x18] sm:$0xff] %v675
        %s682 = sand.u32 %s141, 1
        %s683 = scalar_lea.sflag [#allocation5], %s682
        %s684 = sand.u32 %s141, 1
        %s685 = smul.addr %s684, 32
        %s686 = scalar_lea.vmem [#allocation9], %s685
        // Predicated region
        $region53: #{tpu_custom_call.1} parent=39 // pred_check
          %p687 = pneg %p151
        $region54: #{tpu_custom_call.1} parent=39 // pred_check_branch
          %689 = sbr.rel (%p687) target = $region56
        $region55: #{tpu_custom_call.1} parent=39 // pred_region
          %s690 = smul.u32 4, %s23
          %s692 = ssub.s32 512, 512
          %693 = vsyncadd %s683, %s692
          %s694 = smul.addr %s690, 128
          %s695 = scalar_lea.hbm %s5, %s694
          %s696 = sshll.u32 %s686, 4
          %s697 = int_to_ptr.vmem [resolvable:$true] %s696
          %702 = dma.vmem_to_hbm [thread:$0]  %s697, 512, %s695, %s683, 128, 128, 8
        $region56: #{tpu_custom_call.1} parent=39 // pred_fallthru
          _
      $region40: #{tpu_custom_call.1} parent=5 // pred_fallthru
        _
      %p703 = scmp.le.s32.totalorder 2, %s18
      // Predicated region
      $region57: #{tpu_custom_call.1} parent=5 // pred_check
        %p704 = pneg %p703
      $region58: #{tpu_custom_call.1} parent=5 // pred_check_branch
        %706 = sbr.rel (%p704) target = $region60
      $region59: #{tpu_custom_call.1} parent=5 // pred_region
        %s707 = ssub.s32 %s18, 2
        // Predicated region
        $region61: #{tpu_custom_call.1} parent=59 // pred_check
          %p708 = pneg %p157
        $region62: #{tpu_custom_call.1} parent=59 // pred_check_branch
          %710 = sbr.rel (%p708) target = $region64
        $region63: #{tpu_custom_call.1} parent=59 // pred_region
          %s711 = sand.u32 %s142, 1
          %s712 = scalar_lea.sflag [#allocation5], %s711
          %s713 = sand.u32 %s142, 1
          %s714 = smul.addr %s713, 32
          %s715 = scalar_lea.vmem [#allocation9], %s714
          %716 = dma.done %s712, 512
        $region64: #{tpu_custom_call.1} parent=59 // pred_fallthru
          _
      $region60: #{tpu_custom_call.1} parent=5 // pred_fallthru
        _
    $region6: #{tpu_custom_call.1} parent=1 // loop_footer
      %s22 = sadd.s32 1, %s18
    $region7: #{tpu_custom_call.1} parent=1 // loop_footer_branch
      %17 = sbr.rel target = $region3
    $region8: #{tpu_custom_call.1} parent=1 // loop_exit
      _
    %717 = vsyncpa [#allocation4], 1
    %s718 = scalar_lea.sflag [#allocation4], 1
    %719 = vsyncpa %s718, 1
    %720 = vsyncpa [#allocation7], 1
    %721 = vsyncpa [#allocation5], 1
    %s722 = scalar_lea.sflag [#allocation5], 1
    %723 = vsyncpa %s722, 1

</llo_original>
